<compile_context>
chip_gen: v6e
topology: v6e:2x2x1
jax: 0.10.0
libtpu: 0.0.40
codegen_flags: <defaults>
</compile_context>

<pallas_src>
import functools

import jax
import jax.numpy as jnp
from jax.experimental import pallas as pl
from jax.experimental.pallas import tpu as pltpu


def _round_up(x, m):
    return ((x + m - 1) // m) * m


def _cdiv(a, b):
    return -(-a // b)


# ----------------------------------------------------------------------------
# PointNetfeatModel: conv1(3->64) -> relu -> conv2(64->128) -> relu
#                    -> conv3(128->1024) -> max over points
# Grid = (batch [parallel], point-tile [reduction]); max accumulates in VMEM scratch.
# ----------------------------------------------------------------------------
def _pointnet_feat_kernel(x_ref, w1_ref, b1_ref, w2_ref, b2_ref, w3_ref, b3_ref,
                          o_ref, maxacc_ref):
    pt = pl.program_id(1)

    @pl.when(pt == 0)
    def _():
        maxacc_ref[...] = jnp.full_like(maxacc_ref, -jnp.inf)

    x = x_ref[...]                                                     # (tile_pts, 8) f32
    h = jnp.dot(x, w1_ref[...], preferred_element_type=jnp.float32) + b1_ref[...]
    h = jnp.maximum(h, 0.0)                                            # (tile_pts, 64)
    h = jnp.dot(h, w2_ref[...], preferred_element_type=jnp.float32) + b2_ref[...]
    h = jnp.maximum(h, 0.0)                                            # (tile_pts, 128)
    h = jnp.dot(h, w3_ref[...], preferred_element_type=jnp.float32) + b3_ref[...]
    maxacc_ref[...] = jnp.maximum(maxacc_ref[...],
                                  jnp.max(h, axis=0, keepdims=True))   # (1, 1024)

    @pl.when(pt == pl.num_programs(1) - 1)
    def _():
        o_ref[...] = maxacc_ref[...]


def pointnet_feat(x_bnc, w1, b1, w2, b2, w3, b3):
    """x_bnc: (B, N, 8) f32 (channels zero-padded 3->8, conv1_w padded rows are zero)."""
    B, N, C = x_bnc.shape
    feat_dim = w3.shape[1]

    tile_pts = min(512, _round_up(N, 8))
    n_pad = _round_up(N, tile_pts)
    if n_pad != N:
        # Edge-replicated points do not change the per-batch max-pool.
        x_bnc = jnp.pad(x_bnc, ((0, 0), (0, n_pad - N), (0, 0)), mode="edge")
    n_pt = n_pad // tile_pts

    out = pl.pallas_call(
        _pointnet_feat_kernel,
        out_shape=jax.ShapeDtypeStruct((B, 1, feat_dim), jnp.float32),
        grid=(B, n_pt),
        in_specs=[
            pl.BlockSpec((None, tile_pts, C), lambda b, p: (b, p, 0)),
            pl.BlockSpec(w1.shape, lambda b, p: (0, 0)),
            pl.BlockSpec(b1.shape, lambda b, p: (0, 0)),
            pl.BlockSpec(w2.shape, lambda b, p: (0, 0)),
            pl.BlockSpec(b2.shape, lambda b, p: (0, 0)),
            pl.BlockSpec(w3.shape, lambda b, p: (0, 0)),
            pl.BlockSpec(b3.shape, lambda b, p: (0, 0)),
        ],
        out_specs=pl.BlockSpec((None, 1, feat_dim), lambda b, p: (b, 0, 0)),
        scratch_shapes=[pltpu.VMEM((1, feat_dim), jnp.float32)],
        compiler_params=pltpu.CompilerParams(
            dimension_semantics=("parallel", "arbitrary")),
    )(x_bnc, w1, b1, w2, b2, w3, b3)
    return out.reshape(B, feat_dim)


# ----------------------------------------------------------------------------
# Tiled Linear (+ optional fused ReLU): y = x @ W_t + b
# Grid = (Nout tiles [parallel], K tiles [arbitrary/reduction]); f32 accumulator in
# VMEM scratch, finalized (bias + ReLU + output cast) on the last K step.
# Weights streamed in bf16 (pure weight streaming at B=2); activations chained in bf16.
# ----------------------------------------------------------------------------
def _linear_kernel(x_ref, w_ref, b_ref, o_ref, acc_ref, *, apply_relu):
    k = pl.program_id(1)

    @pl.when(k == 0)
    def _():
        acc_ref[...] = jnp.zeros_like(acc_ref)

    acc_ref[...] += jnp.dot(x_ref[...].astype(w_ref.dtype), w_ref[...],
                            preferred_element_type=jnp.float32)

    @pl.when(k == pl.num_programs(1) - 1)
    def _():
        y = acc_ref[...] + b_ref[...]
        if apply_relu:
            y = jnp.maximum(y, 0.0)
        o_ref[...] = y.astype(o_ref.dtype)


def _choose_n_tiling(np128, tk, w_itemsize, cap_bytes):
    """Pick (tn, padded Np, n_tiles): minimize streamed/padded Np first, then the
    number of N tiles (grid steps), subject to the per-buffer weight-tile byte cap."""
    best = None
    for n in range(1, _cdiv(np128, 128) + 1):
        tn = _round_up(_cdiv(np128, n), 128)
        if tk * tn * w_itemsize > cap_bytes:
            continue
        np_pad = n * tn
        key = (np_pad, n)
        if best is None or key < best[0]:
            best = (key, tn, np_pad, n)
    assert best is not None, "no feasible N tile under the VMEM weight-tile cap"
    _, tn, np_pad, n = best
    return tn, np_pad, n


def linear(x, w_t, b, *, relu, out_dtype=jnp.float32,
           max_tk=2048, weight_tile_cap_bytes=14 << 20):
    """y = x @ w_t + b (optional fused ReLU). w_t is (K, Nout), bf16 recommended;
    accumulation is always f32; output cast to out_dtype."""
    Bm, K = x.shape
    K2, Nout = w_t.shape
    assert K == K2
    w_itemsize = jnp.dtype(w_t.dtype).itemsize
    x_itemsize = jnp.dtype(x.dtype).itemsize
    o_itemsize = jnp.dtype(out_dtype).itemsize

    tk = min(_round_up(K, 128), max_tk)
    Kp = _round_up(K, tk)
    np128 = _round_up(Nout, 128)
    tn, Np, n_tiles = _choose_n_tiling(np128, tk, w_itemsize, weight_tile_cap_bytes)

    if Kp != K:
        x = jnp.pad(x, ((0, 0), (0, Kp - K)))
        w_t = jnp.pad(w_t, ((0, Kp - K), (0, 0)))
    if Np != Nout:
        w_t = jnp.pad(w_t, ((0, 0), (0, Np - Nout)))
        b = jnp.pad(b, ((0, 0), (0, Np - Nout)))
    n_k = Kp // tk

    # Weight buffering depth & VMEM budget from actual buffer math.
    w_tile_bytes = tk * tn * w_itemsize
    n_wbuf = 2 if w_tile_bytes > (8 << 20) else 3
    vmem_bytes = (n_wbuf * w_tile_bytes            # weight buffers
                  + 2 * Bm * tk * x_itemsize       # double-buffered x tiles
                  + 2 * tn * 4                     # double-buffered bias tiles
                  + 2 * Bm * tn * o_itemsize       # double-buffered out tiles
                  + Bm * tn * 4)                   # f32 accumulator scratch
    vmem_limit = min(int(vmem_bytes * 1.25) + (2 << 20), 100 << 20)
    vmem_limit = max(vmem_limit, 16 << 20)

    kernel = functools.partial(_linear_kernel, apply_relu=relu)
    out = pl.pallas_call(
        kernel,
        out_shape=jax.ShapeDtypeStruct((Bm, Np), out_dtype),
        grid=(n_tiles, n_k),
        in_specs=[
            pl.BlockSpec((Bm, tk), lambda j, k: (0, k)),
            pl.BlockSpec((tk, tn), lambda j, k: (k, j),
                         pipeline_mode=pl.Buffered(n_wbuf)),
            pl.BlockSpec((1, tn), lambda j, k: (0, j)),
        ],
        out_specs=pl.BlockSpec((Bm, tn), lambda j, k: (0, j)),
        scratch_shapes=[pltpu.VMEM((Bm, tn), jnp.float32)],
        compiler_params=pltpu.CompilerParams(
            dimension_semantics=("parallel", "arbitrary"),
            vmem_limit_bytes=vmem_limit),
    )(x, w_t, b)
    return out if Np == Nout else out[:, :Nout]


# ----------------------------------------------------------------------------
# Full forward pass (glue in plain JAX: transpose/pad/reshape)
# ----------------------------------------------------------------------------
def regressor_forward(x_b3n, p, num_vertices):
    B, C, N = x_b3n.shape
    # (B, 3, N) -> (B, N, 3); zero-pad channels 3 -> 8 (conv1_w padded rows are zero).
    x_bnc = jnp.transpose(x_b3n, (0, 2, 1)).astype(jnp.float32)
    x_bnc = jnp.pad(x_bnc, ((0, 0), (0, 0), (0, 8 - C)))

    feat = pointnet_feat(x_bnc, p["conv1_w"], p["conv1_b"],
                         p["conv2_w"], p["conv2_b"],
                         p["conv3_w"], p["conv3_b"])                 # (B, 1024) f32

    # MODEL_USE_BN=False -> bn1/bn2/bn3 are Identity; Dropout (eval) is identity.
    # TODO(synk): training-mode dropout (scaled Bernoulli masks via pltpu PRNG) not implemented.
    # TODO(synk): v7x fp8 / v5e-v6e int8 weight-only quant (per-channel scales folded into the
    #             k==last finalize) would roughly halve the memory-bound FC wall time again.
    # TODO(synk): fusing fc1..fc4 into one pallas_call (activations resident in VMEM) is a
    #             further ~5-15us win; kept as separate calls for clarity.
    h = feat.astype(jnp.bfloat16)
    h = linear(h, p["fc1_w"], p["fc1_b"], relu=True, out_dtype=jnp.bfloat16)   # (B, 2048)
    h = linear(h, p["fc2_w"], p["fc2_b"], relu=True, out_dtype=jnp.bfloat16)   # (B, 4096)
    h = linear(h, p["fc3_w"], p["fc3_b"], relu=True, out_dtype=jnp.bfloat16)   # (B, 8192)
    h = linear(h, p["fc4_w"], p["fc4_b"], relu=False, out_dtype=jnp.float32)   # (B, 3*V)
    return h.reshape(-1, 3, num_vertices)                                      # (B, 3, V)


# ----------------------------------------------------------------------------
# Deterministic synthetic parameters + pure-JAX references for verification
# ----------------------------------------------------------------------------
def init_params(key, num_vertices):
    dims_conv = [(8, 64), (64, 128), (128, 1024)]     # conv1/2/3 (Cin padded 3->8)
    dims_fc = [(1024, 2048), (2048, 4096), (4096, 8192), (8192, 3 * num_vertices)]
    names = ["conv1", "conv2", "conv3", "fc1", "fc2", "fc3", "fc4"]
    p = {}
    keys = jax.random.split(key, len(names) * 2)
    for i, (name, (cin, cout)) in enumerate(zip(names, dims_conv + dims_fc)):
        scale = 1.0 / jnp.sqrt(jnp.float32(cin))
        w = jax.random.normal(keys[2 * i], (cin, cout), jnp.float32) * scale
        if name == "conv1":
            w = w.at[3:, :].set(0.0)   # zero the padded input channels (real Cin = 3)
        b = jax.random.normal(keys[2 * i + 1], (1, cout), jnp.float32) * 0.01
        p[f"{name}_w"] = w
        p[f"{name}_b"] = b
    return p


def prepare_kernel_params(p):
    """Cast the big FC weights to bf16 once (weight streaming is the HBM roofline)."""
    q = dict(p)
    for name in ("fc1", "fc2", "fc3", "fc4"):
        q[f"{name}_w"] = p[f"{name}_w"].astype(jnp.bfloat16)
    return q


def _fc_ref(h, w, b, *, relu, quantized):
    if quantized:
        y = jnp.dot(h.astype(jnp.bfloat16), w.astype(jnp.bfloat16),
                    preferred_element_type=jnp.float32) + b
    else:
        y = h @ w + b
    return jax.nn.relu(y) if relu else y


def reference_forward(x_b3n, p, num_vertices, *, quantized):
    x = jnp.transpose(x_b3n, (0, 2, 1)).astype(jnp.float32)
    x = jnp.pad(x, ((0, 0), (0, 0), (0, 8 - x.shape[-1])))
    h = jax.nn.relu(x @ p["conv1_w"] + p["conv1_b"])
    h = jax.nn.relu(h @ p["conv2_w"] + p["conv2_b"])
    h = h @ p["conv3_w"] + p["conv3_b"]
    feat = jnp.max(h, axis=1)
    h = _fc_ref(feat, p["fc1_w"], p["fc1_b"], relu=True, quantized=quantized)
    h = _fc_ref(h, p["fc2_w"], p["fc2_b"], relu=True, quantized=quantized)
    h = _fc_ref(h, p["fc3_w"], p["fc3_b"], relu=True, quantized=quantized)
    h = _fc_ref(h, p["fc4_w"], p["fc4_b"], relu=False, quantized=quantized)
    return h.reshape(-1, 3, num_vertices)


if __name__ == "__main__":
    run_config = {
        "MODEL_USE_BN": False,
        "NUM_VERTICES": 128,   # scaled down from 6890 for this synthetic test
        "DROPOUT_PROB": 0.3,
    }
    B, N = 2, 128
    V = run_config["NUM_VERTICES"]

    key = jax.random.PRNGKey(0)
    k_x, k_p = jax.random.split(key)
    x = jax.random.normal(k_x, (B, 3, N), jnp.float32)
    params = init_params(k_p, V)
    kparams = prepare_kernel_params(params)

    out = jax.block_until_ready(regressor_forward(x, kparams, V))
    assert out.shape == (B, 3, V), out.shape

    # Semantics check vs. a reference that applies the same bf16 weight/activation
    # quantization (f32 accumulation) -> tests the kernel plumbing tightly.
    ref_q = jax.block_until_ready(reference_forward(x, params, V, quantized=True))
    scale_q = jnp.maximum(jnp.max(jnp.abs(ref_q)), 1.0)
    err_q = float(jnp.max(jnp.abs(out - ref_q)) / scale_q)
    assert err_q < 1e-2, f"bf16-matched max relative error {err_q}"

    # Sanity check vs. the full-f32 module semantics (bounds the bf16 quantization error).
    ref_f = jax.block_until_ready(reference_forward(x, params, V, quantized=False))
    scale_f = jnp.maximum(jnp.max(jnp.abs(ref_f)), 1.0)
    err_f = float(jnp.max(jnp.abs(out - ref_f)) / scale_f)
    assert err_f < 5e-2, f"f32-reference max relative error {err_f}"

    print("KERNEL_OK")
</pallas_src>

<mosaic_0001>
module attributes {stable_mosaic.version = 11 : i64} {
  func.func @_pointnet_feat_kernel(%arg0: i32, %arg1: i32, %arg2: memref<1x128x8xf32, #tpu.memory_space<vmem>>, %arg3: memref<8x64xf32, #tpu.memory_space<vmem>>, %arg4: memref<1x64xf32, #tpu.memory_space<vmem>>, %arg5: memref<64x128xf32, #tpu.memory_space<vmem>>, %arg6: memref<1x128xf32, #tpu.memory_space<vmem>>, %arg7: memref<128x1024xf32, #tpu.memory_space<vmem>>, %arg8: memref<1x1024xf32, #tpu.memory_space<vmem>>, %arg9: memref<1x1x1024xf32, #tpu.memory_space<vmem>>, %arg10: memref<1x1024xf32, #tpu.memory_space<vmem>>) attributes {dimension_semantics = [#tpu.dimension_semantics<parallel>, #tpu.dimension_semantics<arbitrary>], iteration_bounds = array<i64: 2, 1>, scalar_prefetch = 0 : i64, scratch_operands = 1 : i64, tpu.core_type = #tpu.core_type<tc>, window_params = [{transform_indices = @transform_0, window_bounds = array<i64: 1, 128, 8>}, {pipeline_mode = #tpu.pipeline_mode<synchronous>, transform_indices = @transform_1, window_bounds = array<i64: 8, 64>}, {pipeline_mode = #tpu.pipeline_mode<synchronous>, transform_indices = @transform_2, window_bounds = array<i64: 1, 64>}, {pipeline_mode = #tpu.pipeline_mode<synchronous>, transform_indices = @transform_3, window_bounds = array<i64: 64, 128>}, {pipeline_mode = #tpu.pipeline_mode<synchronous>, transform_indices = @transform_4, window_bounds = array<i64: 1, 128>}, {pipeline_mode = #tpu.pipeline_mode<synchronous>, transform_indices = @transform_5, window_bounds = array<i64: 128, 1024>}, {pipeline_mode = #tpu.pipeline_mode<synchronous>, transform_indices = @transform_6, window_bounds = array<i64: 1, 1024>}, {transform_indices = @transform_7, window_bounds = array<i64: 1, 1, 1024>}]} {
    %c0_i32 = arith.constant 0 : i32
    %0 = arith.cmpi eq, %arg1, %c0_i32 : i32
    %1 = arith.extui %0 : i1 to i32
    %c0_i32_0 = arith.constant 0 : i32
    %2 = arith.cmpi ne, %1, %c0_i32_0 : i32
    scf.if %2 {
      %cst_26 = arith.constant 0xFF800000 : f32
      %32 = vector.broadcast %cst_26 : f32 to vector<1x1024xf32>
      %c0_27 = arith.constant 0 : index
      %c0_28 = arith.constant 0 : index
      %33 = vector.load %arg10[%c0_27, %c0_28] : memref<1x1024xf32, #tpu.memory_space<vmem>>, vector<1x1024xf32>
      tpu.vector_store %arg10[%c0_27, %c0_28], %32 {strides = array<i32>} : memref<1x1024xf32, #tpu.memory_space<vmem>>, vector<1x1024xf32>,
    } else {
    }
    %c0 = arith.constant 0 : index
    %c0_1 = arith.constant 0 : index
    %c0_2 = arith.constant 0 : index
    %3 = vector.load %arg2[%c0, %c0_1, %c0_2] : memref<1x128x8xf32, #tpu.memory_space<vmem>>, vector<1x128x8xf32>
    %4 = vector.shape_cast %3 : vector<1x128x8xf32> to vector<128x8xf32>
    %c0_3 = arith.constant 0 : index
    %c0_4 = arith.constant 0 : index
    %5 = vector.load %arg3[%c0_3, %c0_4] : memref<8x64xf32, #tpu.memory_space<vmem>>, vector<8x64xf32>
    %cst = arith.constant dense<0.000000e+00> : vector<128x64xf32>
    %6 = tpu.matmul %4, %5, %cst {dimension_numbers = #tpu.dot_dimension_numbers<[1], [0], [0], [1], [0, 0, 1, 1], [], []>} : vector<128x8xf32>, vector<8x64xf32>, vector<128x64xf32> -> vector<128x64xf32>
    %c0_5 = arith.constant 0 : index
    %c0_6 = arith.constant 0 : index
    %7 = vector.load %arg4[%c0_5, %c0_6] : memref<1x64xf32, #tpu.memory_space<vmem>>, vector<1x64xf32>
    %8 = vector.broadcast %7 : vector<1x64xf32> to vector<128x64xf32>
    %9 = arith.addf %6, %8 : vector<128x64xf32>
    %cst_7 = arith.constant 0.000000e+00 : f32
    %10 = vector.broadcast %cst_7 : f32 to vector<128x64xf32>
    %11 = arith.maximumf %9, %10 : vector<128x64xf32>
    %c0_8 = arith.constant 0 : index
    %c0_9 = arith.constant 0 : index
    %12 = vector.load %arg5[%c0_8, %c0_9] : memref<64x128xf32, #tpu.memory_space<vmem>>, vector<64x128xf32>
    %cst_10 = arith.constant dense<0.000000e+00> : vector<128x128xf32>
    %13 = tpu.matmul %11, %12, %cst_10 {dimension_numbers = #tpu.dot_dimension_numbers<[1], [0], [0], [1], [0, 0, 1, 1], [], []>} : vector<128x64xf32>, vector<64x128xf32>, vector<128x128xf32> -> vector<128x128xf32>
    %c0_11 = arith.constant 0 : index
    %c0_12 = arith.constant 0 : index
    %14 = vector.load %arg6[%c0_11, %c0_12] : memref<1x128xf32, #tpu.memory_space<vmem>>, vector<1x128xf32>
    %15 = vector.broadcast %14 : vector<1x128xf32> to vector<128x128xf32>
    %16 = arith.addf %13, %15 : vector<128x128xf32>
    %cst_13 = arith.constant 0.000000e+00 : f32
    %17 = vector.broadcast %cst_13 : f32 to vector<128x128xf32>
    %18 = arith.maximumf %16, %17 : vector<128x128xf32>
    %c0_14 = arith.constant 0 : index
    %c0_15 = arith.constant 0 : index
    %19 = vector.load %arg7[%c0_14, %c0_15] : memref<128x1024xf32, #tpu.memory_space<vmem>>, vector<128x1024xf32>
    %cst_16 = arith.constant dense<0.000000e+00> : vector<128x1024xf32>
    %20 = tpu.matmul %18, %19, %cst_16 {dimension_numbers = #tpu.dot_dimension_numbers<[1], [0], [0], [1], [0, 0, 1, 1], [], []>} : vector<128x128xf32>, vector<128x1024xf32>, vector<128x1024xf32> -> vector<128x1024xf32>
    %c0_17 = arith.constant 0 : index
    %c0_18 = arith.constant 0 : index
    %21 = vector.load %arg8[%c0_17, %c0_18] : memref<1x1024xf32, #tpu.memory_space<vmem>>, vector<1x1024xf32>
    %22 = vector.broadcast %21 : vector<1x1024xf32> to vector<128x1024xf32>
    %23 = arith.addf %20, %22 : vector<128x1024xf32>
    %c0_19 = arith.constant 0 : index
    %c0_20 = arith.constant 0 : index
    %24 = vector.load %arg10[%c0_19, %c0_20] : memref<1x1024xf32, #tpu.memory_space<vmem>>, vector<1x1024xf32>
    %cst_21 = arith.constant dense<0xFF800000> : vector<1024xf32>
    %25 = vector.multi_reduction <maximumf>, %23, %cst_21 [0] : vector<128x1024xf32> to vector<1024xf32>
    %26 = vector.shape_cast %25 : vector<1024xf32> to vector<1x1024xf32>
    %27 = arith.maximumf %24, %26 : vector<1x1024xf32>
    %c0_22 = arith.constant 0 : index
    %c0_23 = arith.constant 0 : index
    %28 = vector.load %arg10[%c0_22, %c0_23] : memref<1x1024xf32, #tpu.memory_space<vmem>>, vector<1x1024xf32>
    tpu.vector_store %arg10[%c0_22, %c0_23], %27 {strides = array<i32>} : memref<1x1024xf32, #tpu.memory_space<vmem>>, vector<1x1024xf32>,
    %c0_i32_24 = arith.constant 0 : i32
    %29 = arith.cmpi eq, %arg1, %c0_i32_24 : i32
    %30 = arith.extui %29 : i1 to i32
    %c0_i32_25 = arith.constant 0 : i32
    %31 = arith.cmpi ne, %30, %c0_i32_25 : i32
    scf.if %31 {
      %c0_26 = arith.constant 0 : index
      %c0_27 = arith.constant 0 : index
      %32 = vector.load %arg10[%c0_26, %c0_27] : memref<1x1024xf32, #tpu.memory_space<vmem>>, vector<1x1024xf32>
      %c0_28 = arith.constant 0 : index
      %c0_29 = arith.constant 0 : index
      %c0_30 = arith.constant 0 : index
      %33 = vector.load %arg9[%c0_28, %c0_29, %c0_30] : memref<1x1x1024xf32, #tpu.memory_space<vmem>>, vector<1x1x1024xf32>
      %34 = vector.shape_cast %33 : vector<1x1x1024xf32> to vector<1x1024xf32>
      %35 = vector.shape_cast %32 : vector<1x1024xf32> to vector<1x1x1024xf32>
      tpu.vector_store %arg9[%c0_28, %c0_29, %c0_30], %35 {strides = array<i32>} : memref<1x1x1024xf32, #tpu.memory_space<vmem>>, vector<1x1x1024xf32>,
    } else {
    }
    return
  }
  func.func @transform_0(%arg0: i32, %arg1: i32) -> (i32, i32, i32) {
    %c0_i32 = arith.constant 0 : i32
    %c0_i32_0 = arith.constant 0 : i32
    return %arg0, %arg1, %c0_i32 : i32, i32, i32
  }
  func.func @transform_1(%arg0: i32, %arg1: i32) -> (i32, i32) {
    %c0_i32 = arith.constant 0 : i32
    %c0_i32_0 = arith.constant 0 : i32
    %c0_i32_1 = arith.constant 0 : i32
    return %c0_i32, %c0_i32_0 : i32, i32
  }
  func.func @transform_2(%arg0: i32, %arg1: i32) -> (i32, i32) {
    %c0_i32 = arith.constant 0 : i32
    %c0_i32_0 = arith.constant 0 : i32
    %c0_i32_1 = arith.constant 0 : i32
    return %c0_i32, %c0_i32_0 : i32, i32
  }
  func.func @transform_3(%arg0: i32, %arg1: i32) -> (i32, i32) {
    %c0_i32 = arith.constant 0 : i32
    %c0_i32_0 = arith.constant 0 : i32
    %c0_i32_1 = arith.constant 0 : i32
    return %c0_i32, %c0_i32_0 : i32, i32
  }
  func.func @transform_4(%arg0: i32, %arg1: i32) -> (i32, i32) {
    %c0_i32 = arith.constant 0 : i32
    %c0_i32_0 = arith.constant 0 : i32
    %c0_i32_1 = arith.constant 0 : i32
    return %c0_i32, %c0_i32_0 : i32, i32
  }
  func.func @transform_5(%arg0: i32, %arg1: i32) -> (i32, i32) {
    %c0_i32 = arith.constant 0 : i32
    %c0_i32_0 = arith.constant 0 : i32
    %c0_i32_1 = arith.constant 0 : i32
    return %c0_i32, %c0_i32_0 : i32, i32
  }
  func.func @transform_6(%arg0: i32, %arg1: i32) -> (i32, i32) {
    %c0_i32 = arith.constant 0 : i32
    %c0_i32_0 = arith.constant 0 : i32
    %c0_i32_1 = arith.constant 0 : i32
    return %c0_i32, %c0_i32_0 : i32, i32
  }
  func.func @transform_7(%arg0: i32, %arg1: i32) -> (i32, i32, i32) {
    %c0_i32 = arith.constant 0 : i32
    %c0_i32_0 = arith.constant 0 : i32
    %c0_i32_1 = arith.constant 0 : i32
    return %arg0, %c0_i32, %c0_i32_0 : i32, i32, i32
  }
}

</mosaic_0001>

<llo_original>
// kernel: tpu_custom_call.1
$region0: #{tpu_custom_call.1}
  #allocation0 [shape = 'u32[]', space=smem, size = 0x4, offset = 0x4, fixed_abs, tag = 'smem constant byte address 0x4 - core index']
  #allocation1 [shape = 'u32[144,128]{1,0:T(1,128)}', space=vmem, size = 0x12000, scoped, tag = 'internal scratch']
  #allocation2 [shape = 'f32[1,1024]{1,0:T(1,128)}', space=vmem, size = 0x1000, scoped, tag = 'scratch operand']
  %s0 = inlined_call_operand.vmem [shape: f32[2,128,8], index: 0, kind: input, shape index: {}]
  %s1 = inlined_call_operand.vmem [shape: f32[8,64], index: 1, kind: input, shape index: {}]
  %s2 = inlined_call_operand.vmem [shape: f32[1,64], index: 2, kind: input, shape index: {}]
  %s3 = inlined_call_operand.vmem [shape: f32[64,128], index: 3, kind: input, shape index: {}]
  %s4 = inlined_call_operand.vmem [shape: f32[1,128], index: 4, kind: input, shape index: {}]
  %s5 = inlined_call_operand.hbm [shape: f32[128,1024], index: 5, kind: input, shape index: {}]
  %s6 = inlined_call_operand.vmem [shape: f32[1,1024], index: 6, kind: input, shape index: {}]
  %s7 = inlined_call_operand.hbm [shape: f32[2,1,1024], index: 7, kind: output, shape index: {}]
  %s8 = sld [smem:[#allocation0]]
  $region73: #{tpu_custom_call.1} parent=0
    _
  %s10 = ssub.s32 1, %s8
  %s11 = scalar_select 0, %s10, %s8
  $region1: #{tpu_custom_call.1} parent=0
    #allocation3 [shape = 'u8[524288]{0}', space=vmem, size = 0x80000, scoped, tag = 'input window, operand 5, single buffered']
    #allocation4 [shape = 's32[2]{0}', space=sflag, size = 0x8, scoped, tag = 'scoped memory for tpu_custom_call.1']
    #allocation5 [shape = 's32[2]{0}', space=sflag, size = 0x8, scoped, tag = 'scoped memory for tpu_custom_call.1']
    #allocation6 [shape = 'u8[8192]{0}', space=vmem, size = 0x2000, scoped, tag = 'output window, operand 0']
    %12 = vsyncpa [#allocation4], 0
    %13 = vsyncpa [#allocation5], 0
    %s14 = scalar_lea.sflag [#allocation5], 1
    %15 = vsyncpa %s14, 0
    loop: start=0, step=1, limit=4
    $region2: #{tpu_custom_call.1} parent=1 // loop_pre_header
      _
    $region3: #{tpu_custom_call.1} parent=1 // loop_header
      %s17 = sphi 0, %s21
      %p18 = scmp.ge.s32.totalorder %s17, 4
      %s24 = sphi 0, %s36
      %s25 = sphi 0, %s32
      %s26 = sphi 0, %s24
      %s27 = sphi 0, %s25
      %s28 = sphi 0, %s26
      %s29 = sphi 0, %s27
      %s41 = sphi 0, %s43
      %s44 = sphi 0, %s41
      %s45 = sphi 0, %s44
      %s61 = sphi 0, %s45
      %s65 = sphi 0, %s65
      %s67 = sphi 0, %s65
      %s68 = sphi 0, %s67
      %s82 = sphi 0, %s68
      %s86 = sphi 0, %s86
      %s88 = sphi 0, %s86
      %s89 = sphi 0, %s88
      %s103 = sphi 0, %s89
      %s107 = sphi 0, %s107
      %s109 = sphi 0, %s107
      %s110 = sphi 0, %s109
      %s124 = sphi 0, %s110
      %s128 = sphi 0, %s128
      %s130 = sphi 0, %s128
      %s131 = sphi 0, %s130
      %s145 = sphi 0, %s131
      %s149 = sphi 0, %s149
      %s151 = sphi 0, %s149
      %s152 = sphi 0, %s151
      %s166 = sphi 0, %s152
      %s170 = sphi 0, %s170
      %s172 = sphi 0, %s170
      %s173 = sphi 0, %s172
      %s187 = sphi 0, %s173
      %s193 = sphi 0, %s195
      %s196 = sphi 0, %s193
      %s197 = sphi 0, %s196
      %s213 = sphi 0, %s197
    $region4: #{tpu_custom_call.1} parent=1 // loop_header_branch
      %20 = sbr.rel (%p18) target = $region8
    $region5: #{tpu_custom_call.1} parent=1 // loop_body
      %s22 = ssub.s32 %s17, 1
      %s23 = ssub.s32 %s17, 2
      %s30 = sadd.s32 1, %s25
      %p31 = scmp.ge.s32.totalorder %s30, 1
      %s32 = scalar_select %p31, 0, %s30
      %s33 = sadd.s32 1, %s24
      %s34 = scalar_select %p31, %s33, %s24
      %p35 = scmp.ge.s32.totalorder %s34, 2
      %s36 = scalar_select %p35, 0, %s34
      %s37 = ssub.s32 %s24, %s36
      %s38 = ssub.s32 %s25, %s32
      %s39 = sor.u32 %s37, %s38
      %p40 = scmp.eq.s32.totalorder %s39, 0
      %s42 = sadd.s32 %s41, 1
      %s43 = scalar_select %p40, %s41, %s42
      %p46 = pneg %p40
      %p47 = scmp.eq.s32.totalorder %s17, 1
      %p48 = por %p46, %p47
      %p49 = scmp.ne.s32.totalorder %s41, %s44
      %p50 = scmp.eq.s32.totalorder %s17, 0
      %p51 = por %p49, %p50
      %p52 = scmp.ne.s32.totalorder %s41, %s44
      %p53 = scmp.eq.s32.totalorder %s22, 1
      %p54 = por %p52, %p53
      %p55 = scmp.ne.s32.totalorder %s44, %s45
      %p56 = scmp.eq.s32.totalorder %s22, 0
      %p57 = por %p55, %p56
      %p58 = scmp.ne.s32.totalorder %s44, %s45
      %p59 = scmp.eq.s32.totalorder %s23, 1
      %p60 = por %p58, %p59
      %p62 = scmp.ne.s32.totalorder %s45, %s61
      %p63 = scmp.eq.s32.totalorder %s23, 0
      %p64 = por %p62, %p63
      %s66 = sadd.s32 %s65, 1
      %p69 = scmp.eq.s32.totalorder %s17, 1
      %p70 = scmp.ne.s32.totalorder %s65, %s67
      %p71 = scmp.eq.s32.totalorder %s17, 0
      %p72 = por %p70, %p71
      %p73 = scmp.ne.s32.totalorder %s65, %s67
      %p74 = scmp.eq.s32.totalorder %s22, 1
      %p75 = por %p73, %p74
      %p76 = scmp.ne.s32.totalorder %s67, %s68
      %p77 = scmp.eq.s32.totalorder %s22, 0
      %p78 = por %p76, %p77
      %p79 = scmp.ne.s32.totalorder %s67, %s68
      %p80 = scmp.eq.s32.totalorder %s23, 1
      %p81 = por %p79, %p80
      %p83 = scmp.ne.s32.totalorder %s68, %s82
      %p84 = scmp.eq.s32.totalorder %s23, 0
      %p85 = por %p83, %p84
      %s87 = sadd.s32 %s86, 1
      %p90 = scmp.eq.s32.totalorder %s17, 1
      %p91 = scmp.ne.s32.totalorder %s86, %s88
      %p92 = scmp.eq.s32.totalorder %s17, 0
      %p93 = por %p91, %p92
      %p94 = scmp.ne.s32.totalorder %s86, %s88
      %p95 = scmp.eq.s32.totalorder %s22, 1
      %p96 = por %p94, %p95
      %p97 = scmp.ne.s32.totalorder %s88, %s89
      %p98 = scmp.eq.s32.totalorder %s22, 0
      %p99 = por %p97, %p98
      %p100 = scmp.ne.s32.totalorder %s88, %s89
      %p101 = scmp.eq.s32.totalorder %s23, 1
      %p102 = por %p100, %p101
      %p104 = scmp.ne.s32.totalorder %s89, %s103
      %p105 = scmp.eq.s32.totalorder %s23, 0
      %p106 = por %p104, %p105
      %s108 = sadd.s32 %s107, 1
      %p111 = scmp.eq.s32.totalorder %s17, 1
      %p112 = scmp.ne.s32.totalorder %s107, %s109
      %p113 = scmp.eq.s32.totalorder %s17, 0
      %p114 = por %p112, %p113
      %p115 = scmp.ne.s32.totalorder %s107, %s109
      %p116 = scmp.eq.s32.totalorder %s22, 1
      %p117 = por %p115, %p116
      %p118 = scmp.ne.s32.totalorder %s109, %s110
      %p119 = scmp.eq.s32.totalorder %s22, 0
      %p120 = por %p118, %p119
      %p121 = scmp.ne.s32.totalorder %s109, %s110
      %p122 = scmp.eq.s32.totalorder %s23, 1
      %p123 = por %p121, %p122
      %p125 = scmp.ne.s32.totalorder %s110, %s124
      %p126 = scmp.eq.s32.totalorder %s23, 0
      %p127 = por %p125, %p126
      %s129 = sadd.s32 %s128, 1
      %p132 = scmp.eq.s32.totalorder %s17, 1
      %p133 = scmp.ne.s32.totalorder %s128, %s130
      %p134 = scmp.eq.s32.totalorder %s17, 0
      %p135 = por %p133, %p134
      %p136 = scmp.ne.s32.totalorder %s128, %s130
      %p137 = scmp.eq.s32.totalorder %s22, 1
      %p138 = por %p136, %p137
      %p139 = scmp.ne.s32.totalorder %s130, %s131
      %p140 = scmp.eq.s32.totalorder %s22, 0
      %p141 = por %p139, %p140
      %p142 = scmp.ne.s32.totalorder %s130, %s131
      %p143 = scmp.eq.s32.totalorder %s23, 1
      %p144 = por %p142, %p143
      %p146 = scmp.ne.s32.totalorder %s131, %s145
      %p147 = scmp.eq.s32.totalorder %s23, 0
      %p148 = por %p146, %p147
      %s150 = sadd.s32 %s149, 1
      %p153 = scmp.eq.s32.totalorder %s17, 1
      %p154 = scmp.ne.s32.totalorder %s149, %s151
      %p155 = scmp.eq.s32.totalorder %s17, 0
      %p156 = por %p154, %p155
      %p157 = scmp.ne.s32.totalorder %s149, %s151
      %p158 = scmp.eq.s32.totalorder %s22, 1
      %p159 = por %p157, %p158
      %p160 = scmp.ne.s32.totalorder %s151, %s152
      %p161 = scmp.eq.s32.totalorder %s22, 0
      %p162 = por %p160, %p161
      %p163 = scmp.ne.s32.totalorder %s151, %s152
      %p164 = scmp.eq.s32.totalorder %s23, 1
      %p165 = por %p163, %p164
      %p167 = scmp.ne.s32.totalorder %s152, %s166
      %p168 = scmp.eq.s32.totalorder %s23, 0
      %p169 = por %p167, %p168
      %s171 = sadd.s32 %s170, 1
      %p174 = scmp.eq.s32.totalorder %s17, 1
      %p175 = scmp.ne.s32.totalorder %s170, %s172
      %p176 = scmp.eq.s32.totalorder %s17, 0
      %p177 = por %p175, %p176
      %p178 = scmp.ne.s32.totalorder %s170, %s172
      %p179 = scmp.eq.s32.totalorder %s22, 1
      %p180 = por %p178, %p179
      %p181 = scmp.ne.s32.totalorder %s172, %s173
      %p182 = scmp.eq.s32.totalorder %s22, 0
      %p183 = por %p181, %p182
      %p184 = scmp.ne.s32.totalorder %s172, %s173
      %p185 = scmp.eq.s32.totalorder %s23, 1
      %p186 = por %p184, %p185
      %p188 = scmp.ne.s32.totalorder %s173, %s187
      %p189 = scmp.eq.s32.totalorder %s23, 0
      %p190 = por %p188, %p189
      %s191 = ssub.s32 %s24, %s36
      %p192 = scmp.eq.s32.totalorder %s191, 0
      %s194 = sadd.s32 %s193, 1
      %s195 = scalar_select %p192, %s193, %s194
      %p198 = pneg %p192
      %p199 = scmp.eq.s32.totalorder %s17, 1
      %p200 = por %p198, %p199
      %p201 = scmp.ne.s32.totalorder %s193, %s196
      %p202 = scmp.eq.s32.totalorder %s17, 0
      %p203 = por %p201, %p202
      %p204 = scmp.ne.s32.totalorder %s193, %s196
      %p205 = scmp.eq.s32.totalorder %s22, 1
      %p206 = por %p204, %p205
      %p207 = scmp.ne.s32.totalorder %s196, %s197
      %p208 = scmp.eq.s32.totalorder %s22, 0
      %p209 = por %p207, %p208
      %p210 = scmp.ne.s32.totalorder %s196, %s197
      %p211 = scmp.eq.s32.totalorder %s23, 1
      %p212 = por %p210, %p211
      %p214 = scmp.ne.s32.totalorder %s197, %s213
      %p215 = scmp.eq.s32.totalorder %s23, 0
      %p216 = por %p214, %p215
      %p217 = scmp.le.s32.totalorder 1, %s17
      %p218 = scmp.lt.s32.totalorder %s17, 3
      %p219 = pnand %p217, %p218
      %p220 = pneg %p219
      // Predicated region
      $region9: #{tpu_custom_call.1} parent=5 // pred_check
        _
      $region10: #{tpu_custom_call.1} parent=5 // pred_check_branch
        %222 = sbr.rel (%p219) target = $region12
      $region11: #{tpu_custom_call.1} parent=5 // pred_region
        %s223 = ssub.s32 %s17, 1
        // Predicated region
        $region13: #{tpu_custom_call.1} parent=11 // pred_check
          %p224 = pneg %p78
        $region14: #{tpu_custom_call.1} parent=11 // pred_check_branch
          %226 = sbr.rel (%p224) target = $region16
        $region15: #{tpu_custom_call.1} parent=11 // pred_region
          _
        $region16: #{tpu_custom_call.1} parent=11 // pred_fallthru
          _
        // Predicated region
        $region17: #{tpu_custom_call.1} parent=11 // pred_check
          %p227 = pneg %p99
        $region18: #{tpu_custom_call.1} parent=11 // pred_check_branch
          %229 = sbr.rel (%p227) target = $region20
        $region19: #{tpu_custom_call.1} parent=11 // pred_region
          _
        $region20: #{tpu_custom_call.1} parent=11 // pred_fallthru
          _
        // Predicated region
        $region21: #{tpu_custom_call.1} parent=11 // pred_check
          %p230 = pneg %p120
        $region22: #{tpu_custom_call.1} parent=11 // pred_check_branch
          %232 = sbr.rel (%p230) target = $region24
        $region23: #{tpu_custom_call.1} parent=11 // pred_region
          _
        $region24: #{tpu_custom_call.1} parent=11 // pred_fallthru
          _
        // Predicated region
        $region25: #{tpu_custom_call.1} parent=11 // pred_check
          %p233 = pneg %p141
        $region26: #{tpu_custom_call.1} parent=11 // pred_check_branch
          %235 = sbr.rel (%p233) target = $region28
        $region27: #{tpu_custom_call.1} parent=11 // pred_region
          _
        $region28: #{tpu_custom_call.1} parent=11 // pred_fallthru
          _
        // Predicated region
        $region29: #{tpu_custom_call.1} parent=11 // pred_check
          %p236 = pneg %p162
        $region30: #{tpu_custom_call.1} parent=11 // pred_check_branch
          %238 = sbr.rel (%p236) target = $region32
        $region31: #{tpu_custom_call.1} parent=11 // pred_region
          %s240 = ssub.s32 16384, 16384
          %241 = vsyncadd [#allocation4], %s240
          %s242 = sshll.u32 [#allocation3], 4
          %s243 = int_to_ptr.vmem [resolvable:$true] %s242
          %248 = dma.hbm_to_vmem [thread:$0]  %s5, 16384, %s243, [#allocation4], 1024, 1024, 64
        $region32: #{tpu_custom_call.1} parent=11 // pred_fallthru
          _
        // Predicated region
        $region33: #{tpu_custom_call.1} parent=11 // pred_check
          %p249 = pneg %p183
        $region34: #{tpu_custom_call.1} parent=11 // pred_check_branch
          %251 = sbr.rel (%p249) target = $region36
        $region35: #{tpu_custom_call.1} parent=11 // pred_region
          _
        $region36: #{tpu_custom_call.1} parent=11 // pred_fallthru
          _
      $region12: #{tpu_custom_call.1} parent=5 // pred_fallthru
        _
      %p252 = scmp.lt.s32.totalorder %s17, 2
      // Predicated region
      $region37: #{tpu_custom_call.1} parent=5 // pred_check
        %p253 = pneg %p252
      $region38: #{tpu_custom_call.1} parent=5 // pred_check_branch
        %255 = sbr.rel (%p253) target = $region40
      $region39: #{tpu_custom_call.1} parent=5 // pred_region
        // Predicated region
        $region41: #{tpu_custom_call.1} parent=39 // pred_check
          %p256 = pneg %p51
        $region42: #{tpu_custom_call.1} parent=39 // pred_check_branch
          %258 = sbr.rel (%p256) target = $region44
        $region43: #{tpu_custom_call.1} parent=39 // pred_region
          %s259 = smul.u32 16, %s25
          %p260 = scmp.lt.s32.totalorder %s24, 1
          %s261 = scalar_select %p260, %s24, 1
          %p262 = scmp.lt.s32.totalorder %s259, 15
          %s263 = scalar_select %p262, %s259, 15
          %s264 = smul.addr %s261, 16
          %s265 = sadd.s32 %s263, %s264
          %s266 = smul.addr %s265, 8
          %s267 = scalar_lea.vmem %s0, %s266
          %s268 = smul.u32 16, %s25
        $region44: #{tpu_custom_call.1} parent=39 // pred_fallthru
          _
      $region40: #{tpu_custom_call.1} parent=5 // pred_fallthru
        _
      %p269 = scmp.le.s32.totalorder 1, %s17
      %p270 = scmp.lt.s32.totalorder %s17, 3
      %p271 = pnand %p269, %p270
      %p272 = pneg %p271
      // Predicated region
      $region45: #{tpu_custom_call.1} parent=5 // pred_check
        _
      $region46: #{tpu_custom_call.1} parent=5 // pred_check_branch
        %274 = sbr.rel (%p271) target = $region48
      $region47: #{tpu_custom_call.1} parent=5 // pred_region
        %s275 = ssub.s32 %s17, 1
        // Predicated region
        $region49: #{tpu_custom_call.1} parent=47 // pred_check
          %p276 = pneg %p162
        $region50: #{tpu_custom_call.1} parent=47 // pred_check_branch
          %278 = sbr.rel (%p276) target = $region52
        $region51: #{tpu_custom_call.1} parent=47 // pred_region
          %279 = dma.done [#allocation4], 16384
        $region52: #{tpu_custom_call.1} parent=47 // pred_fallthru
          _
        %s280 = smul.u32 16, %s27
        %p281 = scmp.lt.s32.totalorder %s26, 1
        %s282 = scalar_select %p281, %s26, 1
        %p283 = scmp.lt.s32.totalorder %s280, 15
        %s284 = scalar_select %p283, %s280, 15
        %s285 = smul.addr %s282, 16
        %s286 = sadd.s32 %s284, %s285
        %s287 = smul.addr %s286, 8
        %s288 = scalar_lea.vmem %s0, %s287
        %p289 = pneg %p57
        %p290 = pneg %p54
        %p291 = pneg %p78
        %p292 = pneg %p75
        %p293 = pneg %p99
        %p294 = pneg %p96
        %p295 = pneg %p120
        %p296 = pneg %p117
        %p297 = pneg %p141
        %p298 = pneg %p138
        %p299 = pneg %p162
        %p300 = pneg %p159
        %p301 = pneg %p183
        %p302 = pneg %p180
        %p303 = pneg %p209
        %p304 = pneg %p206
        %s305 = sand.u32 %s196, 1
        %s306 = scalar_lea.sflag [#allocation5], %s305
        %s307 = sand.u32 %s196, 1
        %s308 = smul.addr %s307, 8
        %s309 = scalar_lea.vmem [#allocation6], %s308
        %s310 = smul.u32 16, %s27
        %p311 = scmp.lt.s32.totalorder %s26, 1
        %s312 = scalar_select %p311, %s26, 1
        %p313 = scmp.lt.s32.totalorder %s310, 15
        %s314 = scalar_select %p313, %s310, 15
        %s315 = smul.addr %s312, 16
        %s316 = sadd.s32 %s314, %s315
        %s317 = smul.addr %s316, 8
        %s318 = scalar_lea.vmem %s0, %s317
        %s319 = smul.u32 16, %s27
        %p320 = scmp.eq.s32.totalorder %s27, 0
        // Predicated region
        $region53: #{tpu_custom_call.1} parent=47 // pred_check
          %p321 = pneg %p320
        $region54: #{tpu_custom_call.1} parent=47 // pred_check_branch
          %323 = sbr.rel (%p321) target = $region56
        $region55: #{tpu_custom_call.1} parent=47 // pred_region
          %324 = vst [vmem:[#allocation2] sm:$0xff] -inf
        $region56: #{tpu_custom_call.1} parent=47 // pred_fallthru
          _
        %v325 = vld [vmem:[%s318] sm:$0xff]
        %v326 = vld [vmem:[%s318 + $0x8] sm:$0xff]
        %v327 = vld [vmem:[%s318 + $0x10] sm:$0xff]
        %v328 = vld [vmem:[%s318 + $0x18] sm:$0xff]
        %v329 = vld [vmem:[%s318 + $0x20] sm:$0xff]
        %v330 = vld [vmem:[%s318 + $0x28] sm:$0xff]
        %v331 = vld [vmem:[%s318 + $0x30] sm:$0xff]
        %v332 = vld [vmem:[%s318 + $0x38] sm:$0xff]
        %v333 = vld [vmem:[%s318 + $0x40] sm:$0xff]
        %v334 = vld [vmem:[%s318 + $0x48] sm:$0xff]
        %v335 = vld [vmem:[%s318 + $0x50] sm:$0xff]
        %v336 = vld [vmem:[%s318 + $0x58] sm:$0xff]
        %v337 = vld [vmem:[%s318 + $0x60] sm:$0xff]
        %v338 = vld [vmem:[%s318 + $0x68] sm:$0xff]
        %v339 = vld [vmem:[%s318 + $0x70] sm:$0xff]
        %v340 = vld [vmem:[%s318 + $0x78] sm:$0xff]
        %v341 = vld [vmem:[%s1] sm:$0xff]
        %v342 = vld [vmem:[%s2] sm:$0x1]
        %v344 = vlaneseq
        %v345 = vshrl.u32 %v344, 7
        %v346 = vsub.s32 0, %v345
        %v347 = vrot.slane %v342, %v346
        %vm349 = vcmask 64512
        %v351 = vsel %vm349, %v325, 0
        %v354 = vsel %vm349, %v326, 0
        %v357 = vsel %vm349, %v327, 0
        %v360 = vsel %vm349, %v328, 0
        %v363 = vsel %vm349, %v329, 0
        %v366 = vsel %vm349, %v330, 0
        %v369 = vsel %vm349, %v331, 0
        %v372 = vsel %vm349, %v332, 0
        %v375 = vsel %vm349, %v333, 0
        %v378 = vsel %vm349, %v334, 0
        %v381 = vsel %vm349, %v335, 0
        %v384 = vsel %vm349, %v336, 0
        %v387 = vsel %vm349, %v337, 0
        %v390 = vsel %vm349, %v338, 0
        %v393 = vsel %vm349, %v339, 0
        %v396 = vsel %vm349, %v340, 0
        %398 = vmatprep.subr.mxu0 0.0
        %399 = vmatpush1.msra.mxu0 0.0
        %400 = vmatprep.subr.mxu0 0.0
        %401 = vmatpush1.msra.mxu0 0.0
        %402 = vmatprep.subr.mxu0 0.0
        %403 = vmatpush1.msra.mxu0 0.0
        %404 = vmatprep.subr.mxu0 0.0
        %405 = vmatpush1.msra.mxu0 0.0
        %406 = vmatprep.subr.mxu0 0.0
        %407 = vmatpush1.msra.mxu0 0.0
        %408 = vmatprep.subr.mxu0 0.0
        %409 = vmatpush1.msra.mxu0 0.0
        %410 = vmatprep.subr.mxu0 0.0
        %411 = vmatpush1.msra.mxu0 0.0
        %412 = vmatprep.subr.mxu0 0.0
        %413 = vmatpush1.msra.mxu0 0.0
        %414 = vmatprep.subr.mxu0 0.0
        %415 = vmatpush1.msra.mxu0 0.0
        %416 = vmatprep.subr.mxu0 0.0
        %417 = vmatpush1.msra.mxu0 0.0
        %418 = vmatprep.subr.mxu0 0.0
        %419 = vmatpush1.msra.mxu0 0.0
        %420 = vmatprep.subr.mxu0 0.0
        %421 = vmatpush1.msra.mxu0 0.0
        %422 = vmatprep.subr.mxu0 0.0
        %423 = vmatpush1.msra.mxu0 0.0
        %424 = vmatprep.subr.mxu0 0.0
        %425 = vmatpush1.msra.mxu0 0.0
        %426 = vmatprep.subr.mxu0 0.0
        %427 = vmatpush1.msra.mxu0 0.0
        %428 = vmatprep.subr.mxu0 0.0
        %429 = vmatpush1.msra.mxu0 %v341
        %430 = vmatprep.subr.mxu0 0.0
        %431 = vmatpush2.msra.mxu0 0.0
        %432 = vmatprep.subr.mxu0 0.0
        %433 = vmatpush2.msra.mxu0 0.0
        %434 = vmatprep.subr.mxu0 0.0
        %435 = vmatpush2.msra.mxu0 0.0
        %436 = vmatprep.subr.mxu0 0.0
        %437 = vmatpush2.msra.mxu0 0.0
        %438 = vmatprep.subr.mxu0 0.0
        %439 = vmatpush2.msra.mxu0 0.0
        %440 = vmatprep.subr.mxu0 0.0
        %441 = vmatpush2.msra.mxu0 0.0
        %442 = vmatprep.subr.mxu0 0.0
        %443 = vmatpush2.msra.mxu0 0.0
        %444 = vmatprep.subr.mxu0 0.0
        %445 = vmatpush2.msra.mxu0 0.0
        %446 = vmatprep.subr.mxu0 0.0
        %447 = vmatpush2.msra.mxu0 0.0
        %448 = vmatprep.subr.mxu0 0.0
        %449 = vmatpush2.msra.mxu0 0.0
        %450 = vmatprep.subr.mxu0 0.0
        %451 = vmatpush2.msra.mxu0 0.0
        %452 = vmatprep.subr.mxu0 0.0
        %453 = vmatpush2.msra.mxu0 0.0
        %454 = vmatprep.subr.mxu0 0.0
        %455 = vmatpush2.msra.mxu0 0.0
        %456 = vmatprep.subr.mxu0 0.0
        %457 = vmatpush2.msra.mxu0 0.0
        %458 = vmatprep.subr.mxu0 0.0
        %459 = vmatpush2.msra.mxu0 0.0
        %460 = vmatprep.subr.mxu0 0.0
        %461 = vmatpush2.msra.mxu0 0.0
        %462 = vmatprep.mubr.f32.mxu0 0.0
        %463 = vmatmul.mubr.f32.gmra.mxu0 %v351
        %v464 = vpop.f32.mrf.mxu0
        %v465 = vadd.f32 %v347, %v464
        %v466 = vpop.f32.mrf.mxu0
        %467 = vmatprep.mubr.f32.mxu0 0.0
        %468 = vmatmul.mubr.f32.gmra.mxu0 %v354
        %v469 = vpop.f32.mrf.mxu0
        %v470 = vadd.f32 %v347, %v469
        %v471 = vpop.f32.mrf.mxu0
        %472 = vmatprep.mubr.f32.mxu0 0.0
        %473 = vmatmul.mubr.f32.gmra.mxu0 %v357
        %v474 = vpop.f32.mrf.mxu0
        %v475 = vadd.f32 %v347, %v474
        %v476 = vpop.f32.mrf.mxu0
        %477 = vmatprep.mubr.f32.mxu0 0.0
        %478 = vmatmul.mubr.f32.gmra.mxu0 %v360
        %v479 = vpop.f32.mrf.mxu0
        %v480 = vadd.f32 %v347, %v479
        %v481 = vpop.f32.mrf.mxu0
        %482 = vmatprep.mubr.f32.mxu0 0.0
        %483 = vmatmul.mubr.f32.gmra.mxu0 %v363
        %v484 = vpop.f32.mrf.mxu0
        %v485 = vadd.f32 %v347, %v484
        %v486 = vpop.f32.mrf.mxu0
        %487 = vmatprep.mubr.f32.mxu0 0.0
        %488 = vmatmul.mubr.f32.gmra.mxu0 %v366
        %v489 = vpop.f32.mrf.mxu0
        %v490 = vadd.f32 %v347, %v489
        %v491 = vpop.f32.mrf.mxu0
        %492 = vmatprep.mubr.f32.mxu0 0.0
        %493 = vmatmul.mubr.f32.gmra.mxu0 %v369
        %v494 = vpop.f32.mrf.mxu0
        %v495 = vadd.f32 %v347, %v494
        %v496 = vpop.f32.mrf.mxu0
        %497 = vmatprep.mubr.f32.mxu0 0.0
        %498 = vmatmul.mubr.f32.gmra.mxu0 %v372
        %v499 = vpop.f32.mrf.mxu0
        %v500 = vadd.f32 %v347, %v499
        %v501 = vpop.f32.mrf.mxu0
        %502 = vmatprep.mubr.f32.mxu0 0.0
        %503 = vmatmul.mubr.f32.gmra.mxu0 %v375
        %v504 = vpop.f32.mrf.mxu0
        %v505 = vadd.f32 %v347, %v504
        %v506 = vpop.f32.mrf.mxu0
        %507 = vmatprep.mubr.f32.mxu0 0.0
        %508 = vmatmul.mubr.f32.gmra.mxu0 %v378
        %v509 = vpop.f32.mrf.mxu0
        %v510 = vadd.f32 %v347, %v509
        %v511 = vpop.f32.mrf.mxu0
        %512 = vmatprep.mubr.f32.mxu0 0.0
        %513 = vmatmul.mubr.f32.gmra.mxu0 %v381
        %v514 = vpop.f32.mrf.mxu0
        %v515 = vadd.f32 %v347, %v514
        %v516 = vpop.f32.mrf.mxu0
        %517 = vmatprep.mubr.f32.mxu0 0.0
        %518 = vmatmul.mubr.f32.gmra.mxu0 %v384
        %v519 = vpop.f32.mrf.mxu0
        %v520 = vadd.f32 %v347, %v519
        %v521 = vpop.f32.mrf.mxu0
        %522 = vmatprep.mubr.f32.mxu0 0.0
        %523 = vmatmul.mubr.f32.gmra.mxu0 %v387
        %v524 = vpop.f32.mrf.mxu0
        %v525 = vadd.f32 %v347, %v524
        %v526 = vpop.f32.mrf.mxu0
        %527 = vmatprep.mubr.f32.mxu0 0.0
        %528 = vmatmul.mubr.f32.gmra.mxu0 %v390
        %v529 = vpop.f32.mrf.mxu0
        %v530 = vadd.f32 %v347, %v529
        %v531 = vpop.f32.mrf.mxu0
        %532 = vmatprep.mubr.f32.mxu0 0.0
        %533 = vmatmul.mubr.f32.gmra.mxu0 %v393
        %v534 = vpop.f32.mrf.mxu0
        %v535 = vadd.f32 %v347, %v534
        %v536 = vpop.f32.mrf.mxu0
        %537 = vmatprep.mubr.f32.mxu0 0.0
        %538 = vmatmul.mubr.f32.gmra.mxu0 %v396
        %v539 = vpop.f32.mrf.mxu0
        %v540 = vadd.f32 %v347, %v539
        %v541 = vpop.f32.mrf.mxu0
        %542 = vdwg.mxu0
        %v543 = vmax.f32 %v465, 0.0
        %v544 = vmax.f32 %v470, 0.0
        %v545 = vmax.f32 %v475, 0.0
        %v546 = vmax.f32 %v480, 0.0
        %v547 = vmax.f32 %v485, 0.0
        %v548 = vmax.f32 %v490, 0.0
        %v549 = vmax.f32 %v495, 0.0
        %v550 = vmax.f32 %v500, 0.0
        %v551 = vmax.f32 %v505, 0.0
        %v552 = vmax.f32 %v510, 0.0
        %v553 = vmax.f32 %v515, 0.0
        %v554 = vmax.f32 %v520, 0.0
        %v555 = vmax.f32 %v525, 0.0
        %v556 = vmax.f32 %v530, 0.0
        %v557 = vmax.f32 %v535, 0.0
        %v558 = vmax.f32 %v540, 0.0
        %v559 = vld [vmem:[%s3] sm:$0xff]
        %v560 = vld [vmem:[%s3 + $0x8] sm:$0xff]
        %v561 = vld [vmem:[%s3 + $0x10] sm:$0xff]
        %v562 = vld [vmem:[%s3 + $0x18] sm:$0xff]
        %v563 = vld [vmem:[%s3 + $0x20] sm:$0xff]
        %v564 = vld [vmem:[%s3 + $0x28] sm:$0xff]
        %v565 = vld [vmem:[%s3 + $0x30] sm:$0xff]
        %v566 = vld [vmem:[%s3 + $0x38] sm:$0xff]
        %v567 = vld [vmem:[%s4] sm:$0x1]
        %v569 = vlaneseq
        %v570 = vshrl.u32 %v569, 7
        %v571 = vsub.s32 0, %v570
        %v572 = vrot.slane %v567, %v571
        %vm574 = vcmask 523264
        %v576 = vsel %vm574, %v543, 0
        %v579 = vsel %vm574, %v544, 0
        %v582 = vsel %vm574, %v545, 0
        %v585 = vsel %vm574, %v546, 0
        %v588 = vsel %vm574, %v547, 0
        %v591 = vsel %vm574, %v548, 0
        %v594 = vsel %vm574, %v549, 0
        %v597 = vsel %vm574, %v550, 0
        %v600 = vsel %vm574, %v551, 0
        %v603 = vsel %vm574, %v552, 0
        %v606 = vsel %vm574, %v553, 0
        %v609 = vsel %vm574, %v554, 0
        %v612 = vsel %vm574, %v555, 0
        %v615 = vsel %vm574, %v556, 0
        %v618 = vsel %vm574, %v557, 0
        %v621 = vsel %vm574, %v558, 0
        %623 = vmatprep.subr.mxu0 0.0
        %624 = vmatpush1.msra.mxu0 0.0
        %625 = vmatprep.subr.mxu0 0.0
        %626 = vmatpush1.msra.mxu0 0.0
        %627 = vmatprep.subr.mxu0 0.0
        %628 = vmatpush1.msra.mxu0 0.0
        %629 = vmatprep.subr.mxu0 0.0
        %630 = vmatpush1.msra.mxu0 0.0
        %631 = vmatprep.subr.mxu0 0.0
        %632 = vmatpush1.msra.mxu0 0.0
        %633 = vmatprep.subr.mxu0 0.0
        %634 = vmatpush1.msra.mxu0 0.0
        %635 = vmatprep.subr.mxu0 0.0
        %636 = vmatpush1.msra.mxu0 0.0
        %637 = vmatprep.subr.mxu0 0.0
        %638 = vmatpush1.msra.mxu0 0.0
        %639 = vmatprep.subr.mxu0 0.0
        %640 = vmatpush1.msra.mxu0 %v566
        %641 = vmatprep.subr.mxu0 0.0
        %642 = vmatpush1.msra.mxu0 %v565
        %643 = vmatprep.subr.mxu0 0.0
        %644 = vmatpush1.msra.mxu0 %v564
        %645 = vmatprep.subr.mxu0 0.0
        %646 = vmatpush1.msra.mxu0 %v563
        %647 = vmatprep.subr.mxu0 0.0
        %648 = vmatpush1.msra.mxu0 %v562
        %649 = vmatprep.subr.mxu0 0.0
        %650 = vmatpush1.msra.mxu0 %v561
        %651 = vmatprep.subr.mxu0 0.0
        %652 = vmatpush1.msra.mxu0 %v560
        %653 = vmatprep.subr.mxu0 0.0
        %654 = vmatpush1.msra.mxu0 %v559
        %655 = vmatprep.subr.mxu0 0.0
        %656 = vmatpush2.msra.mxu0 0.0
        %657 = vmatprep.subr.mxu0 0.0
        %658 = vmatpush2.msra.mxu0 0.0
        %659 = vmatprep.subr.mxu0 0.0
        %660 = vmatpush2.msra.mxu0 0.0
        %661 = vmatprep.subr.mxu0 0.0
        %662 = vmatpush2.msra.mxu0 0.0
        %663 = vmatprep.subr.mxu0 0.0
        %664 = vmatpush2.msra.mxu0 0.0
        %665 = vmatprep.subr.mxu0 0.0
        %666 = vmatpush2.msra.mxu0 0.0
        %667 = vmatprep.subr.mxu0 0.0
        %668 = vmatpush2.msra.mxu0 0.0
        %669 = vmatprep.subr.mxu0 0.0
        %670 = vmatpush2.msra.mxu0 0.0
        %671 = vmatprep.subr.mxu0 0.0
        %672 = vmatpush2.msra.mxu0 0.0
        %673 = vmatprep.subr.mxu0 0.0
        %674 = vmatpush2.msra.mxu0 0.0
        %675 = vmatprep.subr.mxu0 0.0
        %676 = vmatpush2.msra.mxu0 0.0
        %677 = vmatprep.subr.mxu0 0.0
        %678 = vmatpush2.msra.mxu0 0.0
        %679 = vmatprep.subr.mxu0 0.0
        %680 = vmatpush2.msra.mxu0 0.0
        %681 = vmatprep.subr.mxu0 0.0
        %682 = vmatpush2.msra.mxu0 0.0
        %683 = vmatprep.subr.mxu0 0.0
        %684 = vmatpush2.msra.mxu0 0.0
        %685 = vmatprep.subr.mxu0 0.0
        %686 = vmatpush2.msra.mxu0 0.0
        %687 = vmatprep.mubr.f32.mxu0 0.0
        %688 = vmatmul.mubr.f32.gmra.mxu0 %v576
        %v689 = vpop.f32.mrf.mxu0
        %v690 = vadd.f32 %v572, %v689
        %v691 = vpop.f32.mrf.mxu0
        %692 = vmatprep.mubr.f32.mxu0 0.0
        %693 = vmatmul.mubr.f32.gmra.mxu0 %v579
        %v694 = vpop.f32.mrf.mxu0
        %v695 = vadd.f32 %v572, %v694
        %v696 = vpop.f32.mrf.mxu0
        %697 = vmatprep.mubr.f32.mxu0 0.0
        %698 = vmatmul.mubr.f32.gmra.mxu0 %v582
        %v699 = vpop.f32.mrf.mxu0
        %v700 = vadd.f32 %v572, %v699
        %v701 = vpop.f32.mrf.mxu0
        %702 = vmatprep.mubr.f32.mxu0 0.0
        %703 = vmatmul.mubr.f32.gmra.mxu0 %v585
        %v704 = vpop.f32.mrf.mxu0
        %v705 = vadd.f32 %v572, %v704
        %v706 = vpop.f32.mrf.mxu0
        %707 = vmatprep.mubr.f32.mxu0 0.0
        %708 = vmatmul.mubr.f32.gmra.mxu0 %v588
        %v709 = vpop.f32.mrf.mxu0
        %v710 = vadd.f32 %v572, %v709
        %v711 = vpop.f32.mrf.mxu0
        %712 = vmatprep.mubr.f32.mxu0 0.0
        %713 = vmatmul.mubr.f32.gmra.mxu0 %v591
        %v714 = vpop.f32.mrf.mxu0
        %v715 = vadd.f32 %v572, %v714
        %v716 = vpop.f32.mrf.mxu0
        %717 = vmatprep.mubr.f32.mxu0 0.0
        %718 = vmatmul.mubr.f32.gmra.mxu0 %v594
        %v719 = vpop.f32.mrf.mxu0
        %v720 = vadd.f32 %v572, %v719
        %v721 = vpop.f32.mrf.mxu0
        %722 = vmatprep.mubr.f32.mxu0 0.0
        %723 = vmatmul.mubr.f32.gmra.mxu0 %v597
        %v724 = vpop.f32.mrf.mxu0
        %v725 = vadd.f32 %v572, %v724
        %v726 = vpop.f32.mrf.mxu0
        %727 = vmatprep.mubr.f32.mxu0 0.0
        %728 = vmatmul.mubr.f32.gmra.mxu0 %v600
        %v729 = vpop.f32.mrf.mxu0
        %v730 = vadd.f32 %v572, %v729
        %v731 = vpop.f32.mrf.mxu0
        %732 = vmatprep.mubr.f32.mxu0 0.0
        %733 = vmatmul.mubr.f32.gmra.mxu0 %v603
        %v734 = vpop.f32.mrf.mxu0
        %v735 = vadd.f32 %v572, %v734
        %v736 = vpop.f32.mrf.mxu0
        %737 = vmatprep.mubr.f32.mxu0 0.0
        %738 = vmatmul.mubr.f32.gmra.mxu0 %v606
        %v739 = vpop.f32.mrf.mxu0
        %v740 = vadd.f32 %v572, %v739
        %v741 = vpop.f32.mrf.mxu0
        %742 = vmatprep.mubr.f32.mxu0 0.0
        %743 = vmatmul.mubr.f32.gmra.mxu0 %v609
        %v744 = vpop.f32.mrf.mxu0
        %v745 = vadd.f32 %v572, %v744
        %v746 = vpop.f32.mrf.mxu0
        %747 = vmatprep.mubr.f32.mxu0 0.0
        %748 = vmatmul.mubr.f32.gmra.mxu0 %v612
        %v749 = vpop.f32.mrf.mxu0
        %v750 = vadd.f32 %v572, %v749
        %v751 = vpop.f32.mrf.mxu0
        %752 = vmatprep.mubr.f32.mxu0 0.0
        %753 = vmatmul.mubr.f32.gmra.mxu0 %v615
        %v754 = vpop.f32.mrf.mxu0
        %v755 = vadd.f32 %v572, %v754
        %v756 = vpop.f32.mrf.mxu0
        %757 = vmatprep.mubr.f32.mxu0 0.0
        %758 = vmatmul.mubr.f32.gmra.mxu0 %v618
        %v759 = vpop.f32.mrf.mxu0
        %v760 = vadd.f32 %v572, %v759
        %v761 = vpop.f32.mrf.mxu0
        %762 = vmatprep.mubr.f32.mxu0 0.0
        %763 = vmatmul.mubr.f32.gmra.mxu0 %v621
        %v764 = vpop.f32.mrf.mxu0
        %v765 = vadd.f32 %v572, %v764
        %v766 = vpop.f32.mrf.mxu0
        %767 = vdwg.mxu0
        %v768 = vmax.f32 %v690, 0.0
        %v769 = vmax.f32 %v695, 0.0
        %v770 = vmax.f32 %v700, 0.0
        %v771 = vmax.f32 %v705, 0.0
        %v772 = vmax.f32 %v710, 0.0
        %v773 = vmax.f32 %v715, 0.0
        %v774 = vmax.f32 %v720, 0.0
        %v775 = vmax.f32 %v725, 0.0
        %v776 = vmax.f32 %v730, 0.0
        %v777 = vmax.f32 %v735, 0.0
        %v778 = vmax.f32 %v740, 0.0
        %v779 = vmax.f32 %v745, 0.0
        %v780 = vmax.f32 %v750, 0.0
        %v781 = vmax.f32 %v755, 0.0
        %v782 = vmax.f32 %v760, 0.0
        %v783 = vmax.f32 %v765, 0.0
        %v784 = vld [vmem:[#allocation3] sm:$0xff]
        %v785 = vld [vmem:[#allocation3 + $0x8] sm:$0xff]
        %v786 = vld [vmem:[#allocation3 + $0x10] sm:$0xff]
        %v787 = vld [vmem:[#allocation3 + $0x18] sm:$0xff]
        %v788 = vld [vmem:[#allocation3 + $0x20] sm:$0xff]
        %v789 = vld [vmem:[#allocation3 + $0x28] sm:$0xff]
        %v790 = vld [vmem:[#allocation3 + $0x30] sm:$0xff]
        %v791 = vld [vmem:[#allocation3 + $0x38] sm:$0xff]
        %v792 = vld [vmem:[#allocation3 + $0x40] sm:$0xff]
        %v793 = vld [vmem:[#allocation3 + $0x48] sm:$0xff]
        %v794 = vld [vmem:[#allocation3 + $0x50] sm:$0xff]
        %v795 = vld [vmem:[#allocation3 + $0x58] sm:$0xff]
        %v796 = vld [vmem:[#allocation3 + $0x60] sm:$0xff]
        %v797 = vld [vmem:[#allocation3 + $0x68] sm:$0xff]
        %v798 = vld [vmem:[#allocation3 + $0x70] sm:$0xff]
        %v799 = vld [vmem:[#allocation3 + $0x78] sm:$0xff]
        %v800 = vld [vmem:[#allocation3 + $0x80] sm:$0xff]
        %v801 = vld [vmem:[#allocation3 + $0x88] sm:$0xff]
        %v802 = vld [vmem:[#allocation3 + $0x90] sm:$0xff]
        %v803 = vld [vmem:[#allocation3 + $0x98] sm:$0xff]
        %v804 = vld [vmem:[#allocation3 + $0xa0] sm:$0xff]
        %v805 = vld [vmem:[#allocation3 + $0xa8] sm:$0xff]
        %v806 = vld [vmem:[#allocation3 + $0xb0] sm:$0xff]
        %v807 = vld [vmem:[#allocation3 + $0xb8] sm:$0xff]
        %v808 = vld [vmem:[#allocation3 + $0xc0] sm:$0xff]
        %v809 = vld [vmem:[#allocation3 + $0xc8] sm:$0xff]
        %v810 = vld [vmem:[#allocation3 + $0xd0] sm:$0xff]
        %v811 = vld [vmem:[#allocation3 + $0xd8] sm:$0xff]
        %v812 = vld [vmem:[#allocation3 + $0xe0] sm:$0xff]
        %v813 = vld [vmem:[#allocation3 + $0xe8] sm:$0xff]
        %v814 = vld [vmem:[#allocation3 + $0xf0] sm:$0xff]
        %v815 = vld [vmem:[#allocation3 + $0xf8] sm:$0xff]
        %v816 = vld [vmem:[#allocation3 + $0x100] sm:$0xff]
        %v817 = vld [vmem:[#allocation3 + $0x108] sm:$0xff]
        %v818 = vld [vmem:[#allocation3 + $0x110] sm:$0xff]
        %v819 = vld [vmem:[#allocation3 + $0x118] sm:$0xff]
        %v820 = vld [vmem:[#allocation3 + $0x120] sm:$0xff]
        %v821 = vld [vmem:[#allocation3 + $0x128] sm:$0xff]
        %v822 = vld [vmem:[#allocation3 + $0x130] sm:$0xff]
        %v823 = vld [vmem:[#allocation3 + $0x138] sm:$0xff]
        %v824 = vld [vmem:[#allocation3 + $0x140] sm:$0xff]
        %v825 = vld [vmem:[#allocation3 + $0x148] sm:$0xff]
        %v826 = vld [vmem:[#allocation3 + $0x150] sm:$0xff]
        %v827 = vld [vmem:[#allocation3 + $0x158] sm:$0xff]
        %v828 = vld [vmem:[#allocation3 + $0x160] sm:$0xff]
        %v829 = vld [vmem:[#allocation3 + $0x168] sm:$0xff]
        %v830 = vld [vmem:[#allocation3 + $0x170] sm:$0xff]
        %v831 = vld [vmem:[#allocation3 + $0x178] sm:$0xff]
        %v832 = vld [vmem:[#allocation3 + $0x180] sm:$0xff]
        %v833 = vld [vmem:[#allocation3 + $0x188] sm:$0xff]
        %v834 = vld [vmem:[#allocation3 + $0x190] sm:$0xff]
        %v835 = vld [vmem:[#allocation3 + $0x198] sm:$0xff]
        %v836 = vld [vmem:[#allocation3 + $0x1a0] sm:$0xff]
        %v837 = vld [vmem:[#allocation3 + $0x1a8] sm:$0xff]
        %v838 = vld [vmem:[#allocation3 + $0x1b0] sm:$0xff]
        %v839 = vld [vmem:[#allocation3 + $0x1b8] sm:$0xff]
        %v840 = vld [vmem:[#allocation3 + $0x1c0] sm:$0xff]
        %v841 = vld [vmem:[#allocation3 + $0x1c8] sm:$0xff]
        %v842 = vld [vmem:[#allocation3 + $0x1d0] sm:$0xff]
        %v843 = vld [vmem:[#allocation3 + $0x1d8] sm:$0xff]
        %v844 = vld [vmem:[#allocation3 + $0x1e0] sm:$0xff]
        %v845 = vld [vmem:[#allocation3 + $0x1e8] sm:$0xff]
        %v846 = vld [vmem:[#allocation3 + $0x1f0] sm:$0xff]
        %v847 = vld [vmem:[#allocation3 + $0x1f8] sm:$0xff]
        %v848 = vld [vmem:[#allocation3 + $0x200] sm:$0xff]
        %v849 = vld [vmem:[#allocation3 + $0x208] sm:$0xff]
        %v850 = vld [vmem:[#allocation3 + $0x210] sm:$0xff]
        %v851 = vld [vmem:[#allocation3 + $0x218] sm:$0xff]
        %v852 = vld [vmem:[#allocation3 + $0x220] sm:$0xff]
        %v853 = vld [vmem:[#allocation3 + $0x228] sm:$0xff]
        %v854 = vld [vmem:[#allocation3 + $0x230] sm:$0xff]
        %v855 = vld [vmem:[#allocation3 + $0x238] sm:$0xff]
        %v856 = vld [vmem:[#allocation3 + $0x240] sm:$0xff]
        %v857 = vld [vmem:[#allocation3 + $0x248] sm:$0xff]
        %v858 = vld [vmem:[#allocation3 + $0x250] sm:$0xff]
        %v859 = vld [vmem:[#allocation3 + $0x258] sm:$0xff]
        %v860 = vld [vmem:[#allocation3 + $0x260] sm:$0xff]
        %v861 = vld [vmem:[#allocation3 + $0x268] sm:$0xff]
        %v862 = vld [vmem:[#allocation3 + $0x270] sm:$0xff]
        %v863 = vld [vmem:[#allocation3 + $0x278] sm:$0xff]
        %v864 = vld [vmem:[#allocation3 + $0x280] sm:$0xff]
        %v865 = vld [vmem:[#allocation3 + $0x288] sm:$0xff]
        %v866 = vld [vmem:[#allocation3 + $0x290] sm:$0xff]
        %v867 = vld [vmem:[#allocation3 + $0x298] sm:$0xff]
        %v868 = vld [vmem:[#allocation3 + $0x2a0] sm:$0xff]
        %v869 = vld [vmem:[#allocation3 + $0x2a8] sm:$0xff]
        %v870 = vld [vmem:[#allocation3 + $0x2b0] sm:$0xff]
        %v871 = vld [vmem:[#allocation3 + $0x2b8] sm:$0xff]
        %v872 = vld [vmem:[#allocation3 + $0x2c0] sm:$0xff]
        %v873 = vld [vmem:[#allocation3 + $0x2c8] sm:$0xff]
        %v874 = vld [vmem:[#allocation3 + $0x2d0] sm:$0xff]
        %v875 = vld [vmem:[#allocation3 + $0x2d8] sm:$0xff]
        %v876 = vld [vmem:[#allocation3 + $0x2e0] sm:$0xff]
        %v877 = vld [vmem:[#allocation3 + $0x2e8] sm:$0xff]
        %v878 = vld [vmem:[#allocation3 + $0x2f0] sm:$0xff]
        %v879 = vld [vmem:[#allocation3 + $0x2f8] sm:$0xff]
        %v880 = vld [vmem:[#allocation3 + $0x300] sm:$0xff]
        %v881 = vld [vmem:[#allocation3 + $0x308] sm:$0xff]
        %v882 = vld [vmem:[#allocation3 + $0x310] sm:$0xff]
        %v883 = vld [vmem:[#allocation3 + $0x318] sm:$0xff]
        %v884 = vld [vmem:[#allocation3 + $0x320] sm:$0xff]
        %v885 = vld [vmem:[#allocation3 + $0x328] sm:$0xff]
        %v886 = vld [vmem:[#allocation3 + $0x330] sm:$0xff]
        %v887 = vld [vmem:[#allocation3 + $0x338] sm:$0xff]
        %v888 = vld [vmem:[#allocation3 + $0x340] sm:$0xff]
        %v889 = vld [vmem:[#allocation3 + $0x348] sm:$0xff]
        %v890 = vld [vmem:[#allocation3 + $0x350] sm:$0xff]
        %v891 = vld [vmem:[#allocation3 + $0x358] sm:$0xff]
        %v892 = vld [vmem:[#allocation3 + $0x360] sm:$0xff]
        %v893 = vld [vmem:[#allocation3 + $0x368] sm:$0xff]
        %v894 = vld [vmem:[#allocation3 + $0x370] sm:$0xff]
        %v895 = vld [vmem:[#allocation3 + $0x378] sm:$0xff]
        %v896 = vld [vmem:[#allocation3 + $0x380] sm:$0xff]
        %v897 = vld [vmem:[#allocation3 + $0x388] sm:$0xff]
        %v898 = vld [vmem:[#allocation3 + $0x390] sm:$0xff]
        %v899 = vld [vmem:[#allocation3 + $0x398] sm:$0xff]
        %v900 = vld [vmem:[#allocation3 + $0x3a0] sm:$0xff]
        %v901 = vld [vmem:[#allocation3 + $0x3a8] sm:$0xff]
        %v902 = vld [vmem:[#allocation3 + $0x3b0] sm:$0xff]
        %v903 = vld [vmem:[#allocation3 + $0x3b8] sm:$0xff]
        %v904 = vld [vmem:[#allocation3 + $0x3c0] sm:$0xff]
        %v905 = vld [vmem:[#allocation3 + $0x3c8] sm:$0xff]
        %v906 = vld [vmem:[#allocation3 + $0x3d0] sm:$0xff]
        %v907 = vld [vmem:[#allocation3 + $0x3d8] sm:$0xff]
        %v908 = vld [vmem:[#allocation3 + $0x3e0] sm:$0xff]
        %v909 = vld [vmem:[#allocation3 + $0x3e8] sm:$0xff]
        %v910 = vld [vmem:[#allocation3 + $0x3f0] sm:$0xff]
        %v911 = vld [vmem:[#allocation3 + $0x3f8] sm:$0xff]
        %v912 = vld [vmem:[%s6] sm:$0xff]
        %v914 = vlaneseq
        %v915 = vshrl.u32 %v914, 7
        %v916 = vsub.s32 0, %v915
        %v917 = vrot.slane %v912, %v916
        %v918 = vlaneseq
        %v919 = vshrl.u32 %v918, 7
        %v920 = vsub.s32 1, %v919
        %v921 = vrot.slane %v912, %v920
        %v922 = vlaneseq
        %v923 = vshrl.u32 %v922, 7
        %v924 = vsub.s32 2, %v923
        %v925 = vrot.slane %v912, %v924
        %v926 = vlaneseq
        %v927 = vshrl.u32 %v926, 7
        %v928 = vsub.s32 3, %v927
        %v929 = vrot.slane %v912, %v928
        %v930 = vlaneseq
        %v931 = vshrl.u32 %v930, 7
        %v932 = vsub.s32 4, %v931
        %v933 = vrot.slane %v912, %v932
        %v934 = vlaneseq
        %v935 = vshrl.u32 %v934, 7
        %v936 = vsub.s32 5, %v935
        %v937 = vrot.slane %v912, %v936
        %v938 = vlaneseq
        %v939 = vshrl.u32 %v938, 7
        %v940 = vsub.s32 6, %v939
        %v941 = vrot.slane %v912, %v940
        %v942 = vlaneseq
        %v943 = vshrl.u32 %v942, 7
        %v944 = vsub.s32 7, %v943
        %v945 = vrot.slane %v912, %v944
        %954 = vmatprep.subr.mxu0 %v905
        %955 = vmatpush1.msra.mxu0 %v904
        %956 = vmatprep.subr.mxu0 %v897
        %957 = vmatpush1.msra.mxu0 %v896
        %958 = vmatprep.subr.mxu0 %v889
        %959 = vmatpush1.msra.mxu0 %v888
        %960 = vmatprep.subr.mxu0 %v881
        %961 = vmatpush1.msra.mxu0 %v880
        %962 = vmatprep.subr.mxu0 %v873
        %963 = vmatpush1.msra.mxu0 %v872
        %964 = vmatprep.subr.mxu0 %v865
        %965 = vmatpush1.msra.mxu0 %v864
        %966 = vmatprep.subr.mxu0 %v857
        %967 = vmatpush1.msra.mxu0 %v856
        %968 = vmatprep.subr.mxu0 %v849
        %969 = vmatpush1.msra.mxu0 %v848
        %970 = vmatprep.subr.mxu0 %v841
        %971 = vmatpush1.msra.mxu0 %v840
        %972 = vmatprep.subr.mxu0 %v833
        %973 = vmatpush1.msra.mxu0 %v832
        %974 = vmatprep.subr.mxu0 %v825
        %975 = vmatpush1.msra.mxu0 %v824
        %976 = vmatprep.subr.mxu0 %v817
        %977 = vmatpush1.msra.mxu0 %v816
        %978 = vmatprep.subr.mxu0 %v809
        %979 = vmatpush1.msra.mxu0 %v808
        %980 = vmatprep.subr.mxu0 %v801
        %981 = vmatpush1.msra.mxu0 %v800
        %982 = vmatprep.subr.mxu0 %v793
        %983 = vmatpush1.msra.mxu0 %v792
        %984 = vmatprep.subr.mxu0 %v785
        %985 = vmatpush1.msra.mxu0 %v784
        %986 = vmatprep.subr.mxu0 0.0
        %987 = vmatpush2.msra.mxu0 0.0
        %988 = vmatprep.subr.mxu0 0.0
        %989 = vmatpush2.msra.mxu0 0.0
        %990 = vmatprep.subr.mxu0 0.0
        %991 = vmatpush2.msra.mxu0 0.0
        %992 = vmatprep.subr.mxu0 0.0
        %993 = vmatpush2.msra.mxu0 0.0
        %994 = vmatprep.subr.mxu0 0.0
        %995 = vmatpush2.msra.mxu0 0.0
        %996 = vmatprep.subr.mxu0 0.0
        %997 = vmatpush2.msra.mxu0 0.0
        %998 = vmatprep.subr.mxu0 0.0
        %999 = vmatpush2.msra.mxu0 0.0
        %1000 = vmatprep.subr.mxu0 0.0
        %1001 = vmatpush2.msra.mxu0 0.0
        %1002 = vmatprep.subr.mxu0 0.0
        %1003 = vmatpush2.msra.mxu0 0.0
        %1004 = vmatprep.subr.mxu0 0.0
        %1005 = vmatpush2.msra.mxu0 0.0
        %1006 = vmatprep.subr.mxu0 0.0
        %1007 = vmatpush2.msra.mxu0 0.0
        %1008 = vmatprep.subr.mxu0 0.0
        %1009 = vmatpush2.msra.mxu0 0.0
        %1010 = vmatprep.subr.mxu0 0.0
        %1011 = vmatpush2.msra.mxu0 0.0
        %1012 = vmatprep.subr.mxu0 0.0
        %1013 = vmatpush2.msra.mxu0 0.0
        %1014 = vmatprep.subr.mxu0 0.0
        %1015 = vmatpush2.msra.mxu0 0.0
        %1016 = vmatprep.subr.mxu0 0.0
        %1017 = vmatpush2.msra.mxu0 0.0
        %1018 = vmatprep.mubr.f32.mxu0 0.0
        %1019 = vmatmul.mubr.f32.gmra.mxu0 %v768
        %v1020 = vpop.f32.mrf.mxu0
        %v1021 = vadd.f32 %v917, %v1020
        %v1022 = vpop.f32.mrf.mxu0
        %v1023 = vadd.f32 %v921, %v1022
        %1024 = vmatprep.mubr.f32.mxu0 0.0
        %1025 = vmatmul.mubr.f32.gmra.mxu0 %v769
        %v1026 = vpop.f32.mrf.mxu0
        %v1027 = vadd.f32 %v917, %v1026
        %v1028 = vpop.f32.mrf.mxu0
        %v1029 = vadd.f32 %v921, %v1028
        %1030 = vmatprep.mubr.f32.mxu0 0.0
        %1031 = vmatmul.mubr.f32.gmra.mxu0 %v770
        %v1032 = vpop.f32.mrf.mxu0
        %v1033 = vadd.f32 %v917, %v1032
        %v1034 = vpop.f32.mrf.mxu0
        %v1035 = vadd.f32 %v921, %v1034
        %1036 = vmatprep.mubr.f32.mxu0 0.0
        %1037 = vmatmul.mubr.f32.gmra.mxu0 %v771
        %v1038 = vpop.f32.mrf.mxu0
        %v1039 = vadd.f32 %v917, %v1038
        %v1040 = vpop.f32.mrf.mxu0
        %v1041 = vadd.f32 %v921, %v1040
        %1042 = vmatprep.mubr.f32.mxu0 0.0
        %1043 = vmatmul.mubr.f32.gmra.mxu0 %v772
        %v1044 = vpop.f32.mrf.mxu0
        %v1045 = vadd.f32 %v917, %v1044
        %v1046 = vpop.f32.mrf.mxu0
        %v1047 = vadd.f32 %v921, %v1046
        %1048 = vmatprep.mubr.f32.mxu0 0.0
        %1049 = vmatmul.mubr.f32.gmra.mxu0 %v773
        %v1050 = vpop.f32.mrf.mxu0
        %v1051 = vadd.f32 %v917, %v1050
        %v1052 = vpop.f32.mrf.mxu0
        %v1053 = vadd.f32 %v921, %v1052
        %1054 = vmatprep.mubr.f32.mxu0 0.0
        %1055 = vmatmul.mubr.f32.gmra.mxu0 %v774
        %v1056 = vpop.f32.mrf.mxu0
        %v1057 = vadd.f32 %v917, %v1056
        %v1058 = vpop.f32.mrf.mxu0
        %v1059 = vadd.f32 %v921, %v1058
        %1060 = vmatprep.mubr.f32.mxu0 0.0
        %1061 = vmatmul.mubr.f32.gmra.mxu0 %v775
        %v1062 = vpop.f32.mrf.mxu0
        %v1063 = vadd.f32 %v917, %v1062
        %v1064 = vpop.f32.mrf.mxu0
        %v1065 = vadd.f32 %v921, %v1064
        %1066 = vmatprep.mubr.f32.mxu0 0.0
        %1067 = vmatmul.mubr.f32.gmra.mxu0 %v776
        %v1068 = vpop.f32.mrf.mxu0
        %v1069 = vadd.f32 %v917, %v1068
        %v1070 = vpop.f32.mrf.mxu0
        %v1071 = vadd.f32 %v921, %v1070
        %1072 = vmatprep.mubr.f32.mxu0 0.0
        %1073 = vmatmul.mubr.f32.gmra.mxu0 %v777
        %v1074 = vpop.f32.mrf.mxu0
        %v1075 = vadd.f32 %v917, %v1074
        %v1076 = vpop.f32.mrf.mxu0
        %v1077 = vadd.f32 %v921, %v1076
        %1078 = vmatprep.mubr.f32.mxu0 0.0
        %1079 = vmatmul.mubr.f32.gmra.mxu0 %v778
        %v1080 = vpop.f32.mrf.mxu0
        %v1081 = vadd.f32 %v917, %v1080
        %v1082 = vpop.f32.mrf.mxu0
        %v1083 = vadd.f32 %v921, %v1082
        %1084 = vmatprep.mubr.f32.mxu0 0.0
        %1085 = vmatmul.mubr.f32.gmra.mxu0 %v779
        %v1086 = vpop.f32.mrf.mxu0
        %v1087 = vadd.f32 %v917, %v1086
        %v1088 = vpop.f32.mrf.mxu0
        %v1089 = vadd.f32 %v921, %v1088
        %1090 = vmatprep.mubr.f32.mxu0 0.0
        %1091 = vmatmul.mubr.f32.gmra.mxu0 %v780
        %v1092 = vpop.f32.mrf.mxu0
        %v1093 = vadd.f32 %v917, %v1092
        %v1094 = vpop.f32.mrf.mxu0
        %v1095 = vadd.f32 %v921, %v1094
        %1096 = vmatprep.mubr.f32.mxu0 0.0
        %1097 = vmatmul.mubr.f32.gmra.mxu0 %v781
        %v1098 = vpop.f32.mrf.mxu0
        %v1099 = vadd.f32 %v917, %v1098
        %v1100 = vpop.f32.mrf.mxu0
        %v1101 = vadd.f32 %v921, %v1100
        %1102 = vmatprep.mubr.f32.mxu0 0.0
        %1103 = vmatmul.mubr.f32.gmra.mxu0 %v782
        %v1104 = vpop.f32.mrf.mxu0
        %v1105 = vadd.f32 %v917, %v1104
        %v1106 = vpop.f32.mrf.mxu0
        %v1107 = vadd.f32 %v921, %v1106
        %1108 = vmatprep.mubr.f32.mxu0 0.0
        %1109 = vmatmul.mubr.f32.gmra.mxu0 %v783
        %v1110 = vpop.f32.mrf.mxu0
        %v1111 = vadd.f32 %v917, %v1110
        %v1112 = vpop.f32.mrf.mxu0
        %v1113 = vadd.f32 %v921, %v1112
        %1114 = vdwg.mxu0
        %1115 = vmatprep.subr.mxu0 %v907
        %1116 = vmatpush1.msra.mxu0 %v906
        %1117 = vmatprep.subr.mxu0 %v899
        %1118 = vmatpush1.msra.mxu0 %v898
        %1119 = vmatprep.subr.mxu0 %v891
        %1120 = vmatpush1.msra.mxu0 %v890
        %1121 = vmatprep.subr.mxu0 %v883
        %1122 = vmatpush1.msra.mxu0 %v882
        %1123 = vmatprep.subr.mxu0 %v875
        %1124 = vmatpush1.msra.mxu0 %v874
        %1125 = vmatprep.subr.mxu0 %v867
        %1126 = vmatpush1.msra.mxu0 %v866
        %1127 = vmatprep.subr.mxu0 %v859
        %1128 = vmatpush1.msra.mxu0 %v858
        %1129 = vmatprep.subr.mxu0 %v851
        %1130 = vmatpush1.msra.mxu0 %v850
        %1131 = vmatprep.subr.mxu0 %v843
        %1132 = vmatpush1.msra.mxu0 %v842
        %1133 = vmatprep.subr.mxu0 %v835
        %1134 = vmatpush1.msra.mxu0 %v834
        %1135 = vmatprep.subr.mxu0 %v827
        %1136 = vmatpush1.msra.mxu0 %v826
        %1137 = vmatprep.subr.mxu0 %v819
        %1138 = vmatpush1.msra.mxu0 %v818
        %1139 = vmatprep.subr.mxu0 %v811
        %1140 = vmatpush1.msra.mxu0 %v810
        %1141 = vmatprep.subr.mxu0 %v803
        %1142 = vmatpush1.msra.mxu0 %v802
        %1143 = vmatprep.subr.mxu0 %v795
        %1144 = vmatpush1.msra.mxu0 %v794
        %1145 = vmatprep.subr.mxu0 %v787
        %1146 = vmatpush1.msra.mxu0 %v786
        %1147 = vmatprep.subr.mxu0 0.0
        %1148 = vmatpush2.msra.mxu0 0.0
        %1149 = vmatprep.subr.mxu0 0.0
        %1150 = vmatpush2.msra.mxu0 0.0
        %1151 = vmatprep.subr.mxu0 0.0
        %1152 = vmatpush2.msra.mxu0 0.0
        %1153 = vmatprep.subr.mxu0 0.0
        %1154 = vmatpush2.msra.mxu0 0.0
        %1155 = vmatprep.subr.mxu0 0.0
        %1156 = vmatpush2.msra.mxu0 0.0
        %1157 = vmatprep.subr.mxu0 0.0
        %1158 = vmatpush2.msra.mxu0 0.0
        %1159 = vmatprep.subr.mxu0 0.0
        %1160 = vmatpush2.msra.mxu0 0.0
        %1161 = vmatprep.subr.mxu0 0.0
        %1162 = vmatpush2.msra.mxu0 0.0
        %1163 = vmatprep.subr.mxu0 0.0
        %1164 = vmatpush2.msra.mxu0 0.0
        %1165 = vmatprep.subr.mxu0 0.0
        %1166 = vmatpush2.msra.mxu0 0.0
        %1167 = vmatprep.subr.mxu0 0.0
        %1168 = vmatpush2.msra.mxu0 0.0
        %1169 = vmatprep.subr.mxu0 0.0
        %1170 = vmatpush2.msra.mxu0 0.0
        %1171 = vmatprep.subr.mxu0 0.0
        %1172 = vmatpush2.msra.mxu0 0.0
        %1173 = vmatprep.subr.mxu0 0.0
        %1174 = vmatpush2.msra.mxu0 0.0
        %1175 = vmatprep.subr.mxu0 0.0
        %1176 = vmatpush2.msra.mxu0 0.0
        %1177 = vmatprep.subr.mxu0 0.0
        %1178 = vmatpush2.msra.mxu0 0.0
        %1179 = vmatprep.mubr.f32.mxu0 0.0
        %1180 = vmatmul.mubr.f32.gmra.mxu0 %v768
        %v1181 = vpop.f32.mrf.mxu0
        %v1182 = vadd.f32 %v925, %v1181
        %v1183 = vpop.f32.mrf.mxu0
        %v1184 = vadd.f32 %v929, %v1183
        %1185 = vmatprep.mubr.f32.mxu0 0.0
        %1186 = vmatmul.mubr.f32.gmra.mxu0 %v769
        %v1187 = vpop.f32.mrf.mxu0
        %v1188 = vadd.f32 %v925, %v1187
        %v1189 = vpop.f32.mrf.mxu0
        %v1190 = vadd.f32 %v929, %v1189
        %1191 = vmatprep.mubr.f32.mxu0 0.0
        %1192 = vmatmul.mubr.f32.gmra.mxu0 %v770
        %v1193 = vpop.f32.mrf.mxu0
        %v1194 = vadd.f32 %v925, %v1193
        %v1195 = vpop.f32.mrf.mxu0
        %v1196 = vadd.f32 %v929, %v1195
        %1197 = vmatprep.mubr.f32.mxu0 0.0
        %1198 = vmatmul.mubr.f32.gmra.mxu0 %v771
        %v1199 = vpop.f32.mrf.mxu0
        %v1200 = vadd.f32 %v925, %v1199
        %v1201 = vpop.f32.mrf.mxu0
        %v1202 = vadd.f32 %v929, %v1201
        %1203 = vmatprep.mubr.f32.mxu0 0.0
        %1204 = vmatmul.mubr.f32.gmra.mxu0 %v772
        %v1205 = vpop.f32.mrf.mxu0
        %v1206 = vadd.f32 %v925, %v1205
        %v1207 = vpop.f32.mrf.mxu0
        %v1208 = vadd.f32 %v929, %v1207
        %1209 = vmatprep.mubr.f32.mxu0 0.0
        %1210 = vmatmul.mubr.f32.gmra.mxu0 %v773
        %v1211 = vpop.f32.mrf.mxu0
        %v1212 = vadd.f32 %v925, %v1211
        %v1213 = vpop.f32.mrf.mxu0
        %v1214 = vadd.f32 %v929, %v1213
        %1215 = vmatprep.mubr.f32.mxu0 0.0
        %1216 = vmatmul.mubr.f32.gmra.mxu0 %v774
        %v1217 = vpop.f32.mrf.mxu0
        %v1218 = vadd.f32 %v925, %v1217
        %v1219 = vpop.f32.mrf.mxu0
        %v1220 = vadd.f32 %v929, %v1219
        %1221 = vmatprep.mubr.f32.mxu0 0.0
        %1222 = vmatmul.mubr.f32.gmra.mxu0 %v775
        %v1223 = vpop.f32.mrf.mxu0
        %v1224 = vadd.f32 %v925, %v1223
        %v1225 = vpop.f32.mrf.mxu0
        %v1226 = vadd.f32 %v929, %v1225
        %1227 = vmatprep.mubr.f32.mxu0 0.0
        %1228 = vmatmul.mubr.f32.gmra.mxu0 %v776
        %v1229 = vpop.f32.mrf.mxu0
        %v1230 = vadd.f32 %v925, %v1229
        %v1231 = vpop.f32.mrf.mxu0
        %v1232 = vadd.f32 %v929, %v1231
        %1233 = vmatprep.mubr.f32.mxu0 0.0
        %1234 = vmatmul.mubr.f32.gmra.mxu0 %v777
        %v1235 = vpop.f32.mrf.mxu0
        %v1236 = vadd.f32 %v925, %v1235
        %v1237 = vpop.f32.mrf.mxu0
        %v1238 = vadd.f32 %v929, %v1237
        %1239 = vmatprep.mubr.f32.mxu0 0.0
        %1240 = vmatmul.mubr.f32.gmra.mxu0 %v778
        %v1241 = vpop.f32.mrf.mxu0
        %v1242 = vadd.f32 %v925, %v1241
        %v1243 = vpop.f32.mrf.mxu0
        %v1244 = vadd.f32 %v929, %v1243
        %1245 = vmatprep.mubr.f32.mxu0 0.0
        %1246 = vmatmul.mubr.f32.gmra.mxu0 %v779
        %v1247 = vpop.f32.mrf.mxu0
        %v1248 = vadd.f32 %v925, %v1247
        %v1249 = vpop.f32.mrf.mxu0
        %v1250 = vadd.f32 %v929, %v1249
        %1251 = vmatprep.mubr.f32.mxu0 0.0
        %1252 = vmatmul.mubr.f32.gmra.mxu0 %v780
        %v1253 = vpop.f32.mrf.mxu0
        %v1254 = vadd.f32 %v925, %v1253
        %v1255 = vpop.f32.mrf.mxu0
        %v1256 = vadd.f32 %v929, %v1255
        %1257 = vmatprep.mubr.f32.mxu0 0.0
        %1258 = vmatmul.mubr.f32.gmra.mxu0 %v781
        %v1259 = vpop.f32.mrf.mxu0
        %v1260 = vadd.f32 %v925, %v1259
        %v1261 = vpop.f32.mrf.mxu0
        %v1262 = vadd.f32 %v929, %v1261
        %1263 = vmatprep.mubr.f32.mxu0 0.0
        %1264 = vmatmul.mubr.f32.gmra.mxu0 %v782
        %v1265 = vpop.f32.mrf.mxu0
        %v1266 = vadd.f32 %v925, %v1265
        %v1267 = vpop.f32.mrf.mxu0
        %v1268 = vadd.f32 %v929, %v1267
        %1269 = vmatprep.mubr.f32.mxu0 0.0
        %1270 = vmatmul.mubr.f32.gmra.mxu0 %v783
        %v1271 = vpop.f32.mrf.mxu0
        %v1272 = vadd.f32 %v925, %v1271
        %v1273 = vpop.f32.mrf.mxu0
        %v1274 = vadd.f32 %v929, %v1273
        %1275 = vdwg.mxu0
        %1276 = vmatprep.subr.mxu0 %v909
        %1277 = vmatpush1.msra.mxu0 %v908
        %1278 = vmatprep.subr.mxu0 %v901
        %1279 = vmatpush1.msra.mxu0 %v900
        %1280 = vmatprep.subr.mxu0 %v893
        %1281 = vmatpush1.msra.mxu0 %v892
        %1282 = vmatprep.subr.mxu0 %v885
        %1283 = vmatpush1.msra.mxu0 %v884
        %1284 = vmatprep.subr.mxu0 %v877
        %1285 = vmatpush1.msra.mxu0 %v876
        %1286 = vmatprep.subr.mxu0 %v869
        %1287 = vmatpush1.msra.mxu0 %v868
        %1288 = vmatprep.subr.mxu0 %v861
        %1289 = vmatpush1.msra.mxu0 %v860
        %1290 = vmatprep.subr.mxu0 %v853
        %1291 = vmatpush1.msra.mxu0 %v852
        %1292 = vmatprep.subr.mxu0 %v845
        %1293 = vmatpush1.msra.mxu0 %v844
        %1294 = vmatprep.subr.mxu0 %v837
        %1295 = vmatpush1.msra.mxu0 %v836
        %1296 = vmatprep.subr.mxu0 %v829
        %1297 = vmatpush1.msra.mxu0 %v828
        %1298 = vmatprep.subr.mxu0 %v821
        %1299 = vmatpush1.msra.mxu0 %v820
        %1300 = vmatprep.subr.mxu0 %v813
        %1301 = vmatpush1.msra.mxu0 %v812
        %1302 = vmatprep.subr.mxu0 %v805
        %1303 = vmatpush1.msra.mxu0 %v804
        %1304 = vmatprep.subr.mxu0 %v797
        %1305 = vmatpush1.msra.mxu0 %v796
        %1306 = vmatprep.subr.mxu0 %v789
        %1307 = vmatpush1.msra.mxu0 %v788
        %1308 = vmatprep.subr.mxu0 0.0
        %1309 = vmatpush2.msra.mxu0 0.0
        %1310 = vmatprep.subr.mxu0 0.0
        %1311 = vmatpush2.msra.mxu0 0.0
        %1312 = vmatprep.subr.mxu0 0.0
        %1313 = vmatpush2.msra.mxu0 0.0
        %1314 = vmatprep.subr.mxu0 0.0
        %1315 = vmatpush2.msra.mxu0 0.0
        %1316 = vmatprep.subr.mxu0 0.0
        %1317 = vmatpush2.msra.mxu0 0.0
        %1318 = vmatprep.subr.mxu0 0.0
        %1319 = vmatpush2.msra.mxu0 0.0
        %1320 = vmatprep.subr.mxu0 0.0
        %1321 = vmatpush2.msra.mxu0 0.0
        %1322 = vmatprep.subr.mxu0 0.0
        %1323 = vmatpush2.msra.mxu0 0.0
        %1324 = vmatprep.subr.mxu0 0.0
        %1325 = vmatpush2.msra.mxu0 0.0
        %1326 = vmatprep.subr.mxu0 0.0
        %1327 = vmatpush2.msra.mxu0 0.0
        %1328 = vmatprep.subr.mxu0 0.0
        %1329 = vmatpush2.msra.mxu0 0.0
        %1330 = vmatprep.subr.mxu0 0.0
        %1331 = vmatpush2.msra.mxu0 0.0
        %1332 = vmatprep.subr.mxu0 0.0
        %1333 = vmatpush2.msra.mxu0 0.0
        %1334 = vmatprep.subr.mxu0 0.0
        %1335 = vmatpush2.msra.mxu0 0.0
        %1336 = vmatprep.subr.mxu0 0.0
        %1337 = vmatpush2.msra.mxu0 0.0
        %1338 = vmatprep.subr.mxu0 0.0
        %1339 = vmatpush2.msra.mxu0 0.0
        %1340 = vmatprep.mubr.f32.mxu0 0.0
        %1341 = vmatmul.mubr.f32.gmra.mxu0 %v768
        %v1342 = vpop.f32.mrf.mxu0
        %v1343 = vadd.f32 %v933, %v1342
        %v1344 = vpop.f32.mrf.mxu0
        %v1345 = vadd.f32 %v937, %v1344
        %1346 = vmatprep.mubr.f32.mxu0 0.0
        %1347 = vmatmul.mubr.f32.gmra.mxu0 %v769
        %v1348 = vpop.f32.mrf.mxu0
        %v1349 = vadd.f32 %v933, %v1348
        %v1350 = vpop.f32.mrf.mxu0
        %v1351 = vadd.f32 %v937, %v1350
        %1352 = vmatprep.mubr.f32.mxu0 0.0
        %1353 = vmatmul.mubr.f32.gmra.mxu0 %v770
        %v1354 = vpop.f32.mrf.mxu0
        %v1355 = vadd.f32 %v933, %v1354
        %v1356 = vpop.f32.mrf.mxu0
        %v1357 = vadd.f32 %v937, %v1356
        %1358 = vmatprep.mubr.f32.mxu0 0.0
        %1359 = vmatmul.mubr.f32.gmra.mxu0 %v771
        %v1360 = vpop.f32.mrf.mxu0
        %v1361 = vadd.f32 %v933, %v1360
        %v1362 = vpop.f32.mrf.mxu0
        %v1363 = vadd.f32 %v937, %v1362
        %1364 = vmatprep.mubr.f32.mxu0 0.0
        %1365 = vmatmul.mubr.f32.gmra.mxu0 %v772
        %v1366 = vpop.f32.mrf.mxu0
        %v1367 = vadd.f32 %v933, %v1366
        %v1368 = vpop.f32.mrf.mxu0
        %v1369 = vadd.f32 %v937, %v1368
        %1370 = vmatprep.mubr.f32.mxu0 0.0
        %1371 = vmatmul.mubr.f32.gmra.mxu0 %v773
        %v1372 = vpop.f32.mrf.mxu0
        %v1373 = vadd.f32 %v933, %v1372
        %v1374 = vpop.f32.mrf.mxu0
        %v1375 = vadd.f32 %v937, %v1374
        %1376 = vmatprep.mubr.f32.mxu0 0.0
        %1377 = vmatmul.mubr.f32.gmra.mxu0 %v774
        %v1378 = vpop.f32.mrf.mxu0
        %v1379 = vadd.f32 %v933, %v1378
        %v1380 = vpop.f32.mrf.mxu0
        %v1381 = vadd.f32 %v937, %v1380
        %1382 = vmatprep.mubr.f32.mxu0 0.0
        %1383 = vmatmul.mubr.f32.gmra.mxu0 %v775
        %v1384 = vpop.f32.mrf.mxu0
        %v1385 = vadd.f32 %v933, %v1384
        %v1386 = vpop.f32.mrf.mxu0
        %v1387 = vadd.f32 %v937, %v1386
        %1388 = vmatprep.mubr.f32.mxu0 0.0
        %1389 = vmatmul.mubr.f32.gmra.mxu0 %v776
        %v1390 = vpop.f32.mrf.mxu0
        %v1391 = vadd.f32 %v933, %v1390
        %v1392 = vpop.f32.mrf.mxu0
        %v1393 = vadd.f32 %v937, %v1392
        %1394 = vmatprep.mubr.f32.mxu0 0.0
        %1395 = vmatmul.mubr.f32.gmra.mxu0 %v777
        %v1396 = vpop.f32.mrf.mxu0
        %v1397 = vadd.f32 %v933, %v1396
        %v1398 = vpop.f32.mrf.mxu0
        %v1399 = vadd.f32 %v937, %v1398
        %1400 = vmatprep.mubr.f32.mxu0 0.0
        %1401 = vmatmul.mubr.f32.gmra.mxu0 %v778
        %v1402 = vpop.f32.mrf.mxu0
        %v1403 = vadd.f32 %v933, %v1402
        %v1404 = vpop.f32.mrf.mxu0
        %v1405 = vadd.f32 %v937, %v1404
        %1406 = vmatprep.mubr.f32.mxu0 0.0
        %1407 = vmatmul.mubr.f32.gmra.mxu0 %v779
        %v1408 = vpop.f32.mrf.mxu0
        %v1409 = vadd.f32 %v933, %v1408
        %v1410 = vpop.f32.mrf.mxu0
        %v1411 = vadd.f32 %v937, %v1410
        %1412 = vmatprep.mubr.f32.mxu0 0.0
        %1413 = vmatmul.mubr.f32.gmra.mxu0 %v780
        %v1414 = vpop.f32.mrf.mxu0
        %v1415 = vadd.f32 %v933, %v1414
        %v1416 = vpop.f32.mrf.mxu0
        %v1417 = vadd.f32 %v937, %v1416
        %1418 = vmatprep.mubr.f32.mxu0 0.0
        %1419 = vmatmul.mubr.f32.gmra.mxu0 %v781
        %v1420 = vpop.f32.mrf.mxu0
        %v1421 = vadd.f32 %v933, %v1420
        %v1422 = vpop.f32.mrf.mxu0
        %v1423 = vadd.f32 %v937, %v1422
        %1424 = vmatprep.mubr.f32.mxu0 0.0
        %1425 = vmatmul.mubr.f32.gmra.mxu0 %v782
        %v1426 = vpop.f32.mrf.mxu0
        %v1427 = vadd.f32 %v933, %v1426
        %v1428 = vpop.f32.mrf.mxu0
        %v1429 = vadd.f32 %v937, %v1428
        %1430 = vmatprep.mubr.f32.mxu0 0.0
        %1431 = vmatmul.mubr.f32.gmra.mxu0 %v783
        %v1432 = vpop.f32.mrf.mxu0
        %v1433 = vadd.f32 %v933, %v1432
        %v1434 = vpop.f32.mrf.mxu0
        %v1435 = vadd.f32 %v937, %v1434
        %1436 = vdwg.mxu0
        %1437 = vmatprep.subr.mxu0 %v911
        %1438 = vmatpush1.msra.mxu0 %v910
        %1439 = vmatprep.subr.mxu0 %v903
        %1440 = vmatpush1.msra.mxu0 %v902
        %1441 = vmatprep.subr.mxu0 %v895
        %1442 = vmatpush1.msra.mxu0 %v894
        %1443 = vmatprep.subr.mxu0 %v887
        %1444 = vmatpush1.msra.mxu0 %v886
        %1445 = vmatprep.subr.mxu0 %v879
        %1446 = vmatpush1.msra.mxu0 %v878
        %1447 = vmatprep.subr.mxu0 %v871
        %1448 = vmatpush1.msra.mxu0 %v870
        %1449 = vmatprep.subr.mxu0 %v863
        %1450 = vmatpush1.msra.mxu0 %v862
        %1451 = vmatprep.subr.mxu0 %v855
        %1452 = vmatpush1.msra.mxu0 %v854
        %1453 = vmatprep.subr.mxu0 %v847
        %1454 = vmatpush1.msra.mxu0 %v846
        %1455 = vmatprep.subr.mxu0 %v839
        %1456 = vmatpush1.msra.mxu0 %v838
        %1457 = vmatprep.subr.mxu0 %v831
        %1458 = vmatpush1.msra.mxu0 %v830
        %1459 = vmatprep.subr.mxu0 %v823
        %1460 = vmatpush1.msra.mxu0 %v822
        %1461 = vmatprep.subr.mxu0 %v815
        %1462 = vmatpush1.msra.mxu0 %v814
        %1463 = vmatprep.subr.mxu0 %v807
        %1464 = vmatpush1.msra.mxu0 %v806
        %1465 = vmatprep.subr.mxu0 %v799
        %1466 = vmatpush1.msra.mxu0 %v798
        %1467 = vmatprep.subr.mxu0 %v791
        %1468 = vmatpush1.msra.mxu0 %v790
        %1469 = vmatprep.subr.mxu0 0.0
        %1470 = vmatpush2.msra.mxu0 0.0
        %1471 = vmatprep.subr.mxu0 0.0
        %1472 = vmatpush2.msra.mxu0 0.0
        %1473 = vmatprep.subr.mxu0 0.0
        %1474 = vmatpush2.msra.mxu0 0.0
        %1475 = vmatprep.subr.mxu0 0.0
        %1476 = vmatpush2.msra.mxu0 0.0
        %1477 = vmatprep.subr.mxu0 0.0
        %1478 = vmatpush2.msra.mxu0 0.0
        %1479 = vmatprep.subr.mxu0 0.0
        %1480 = vmatpush2.msra.mxu0 0.0
        %1481 = vmatprep.subr.mxu0 0.0
        %1482 = vmatpush2.msra.mxu0 0.0
        %1483 = vmatprep.subr.mxu0 0.0
        %1484 = vmatpush2.msra.mxu0 0.0
        %1485 = vmatprep.subr.mxu0 0.0
        %1486 = vmatpush2.msra.mxu0 0.0
        %1487 = vmatprep.subr.mxu0 0.0
        %1488 = vmatpush2.msra.mxu0 0.0
        %1489 = vmatprep.subr.mxu0 0.0
        %1490 = vmatpush2.msra.mxu0 0.0
        %1491 = vmatprep.subr.mxu0 0.0
        %1492 = vmatpush2.msra.mxu0 0.0
        %1493 = vmatprep.subr.mxu0 0.0
        %1494 = vmatpush2.msra.mxu0 0.0
        %1495 = vmatprep.subr.mxu0 0.0
        %1496 = vmatpush2.msra.mxu0 0.0
        %1497 = vmatprep.subr.mxu0 0.0
        %1498 = vmatpush2.msra.mxu0 0.0
        %1499 = vmatprep.subr.mxu0 0.0
        %1500 = vmatpush2.msra.mxu0 0.0
        %1501 = vmatprep.mubr.f32.mxu0 0.0
        %1502 = vmatmul.mubr.f32.gmra.mxu0 %v768
        %v1503 = vpop.f32.mrf.mxu0
        %v1504 = vadd.f32 %v941, %v1503
        %v1505 = vpop.f32.mrf.mxu0
        %v1506 = vadd.f32 %v945, %v1505
        %1507 = vmatprep.mubr.f32.mxu0 0.0
        %1508 = vmatmul.mubr.f32.gmra.mxu0 %v769
        %v1509 = vpop.f32.mrf.mxu0
        %v1510 = vadd.f32 %v941, %v1509
        %v1511 = vpop.f32.mrf.mxu0
        %v1512 = vadd.f32 %v945, %v1511
        %1513 = vmatprep.mubr.f32.mxu0 0.0
        %1514 = vmatmul.mubr.f32.gmra.mxu0 %v770
        %v1515 = vpop.f32.mrf.mxu0
        %v1516 = vadd.f32 %v941, %v1515
        %v1517 = vpop.f32.mrf.mxu0
        %v1518 = vadd.f32 %v945, %v1517
        %1519 = vmatprep.mubr.f32.mxu0 0.0
        %1520 = vmatmul.mubr.f32.gmra.mxu0 %v771
        %v1521 = vpop.f32.mrf.mxu0
        %v1522 = vadd.f32 %v941, %v1521
        %v1523 = vpop.f32.mrf.mxu0
        %v1524 = vadd.f32 %v945, %v1523
        %1525 = vmatprep.mubr.f32.mxu0 0.0
        %1526 = vmatmul.mubr.f32.gmra.mxu0 %v772
        %v1527 = vpop.f32.mrf.mxu0
        %v1528 = vadd.f32 %v941, %v1527
        %v1529 = vpop.f32.mrf.mxu0
        %v1530 = vadd.f32 %v945, %v1529
        %1531 = vmatprep.mubr.f32.mxu0 0.0
        %1532 = vmatmul.mubr.f32.gmra.mxu0 %v773
        %v1533 = vpop.f32.mrf.mxu0
        %v1534 = vadd.f32 %v941, %v1533
        %v1535 = vpop.f32.mrf.mxu0
        %v1536 = vadd.f32 %v945, %v1535
        %1537 = vmatprep.mubr.f32.mxu0 0.0
        %1538 = vmatmul.mubr.f32.gmra.mxu0 %v774
        %v1539 = vpop.f32.mrf.mxu0
        %v1540 = vadd.f32 %v941, %v1539
        %v1541 = vpop.f32.mrf.mxu0
        %v1542 = vadd.f32 %v945, %v1541
        %1543 = vmatprep.mubr.f32.mxu0 0.0
        %1544 = vmatmul.mubr.f32.gmra.mxu0 %v775
        %v1545 = vpop.f32.mrf.mxu0
        %v1546 = vadd.f32 %v941, %v1545
        %v1547 = vpop.f32.mrf.mxu0
        %v1548 = vadd.f32 %v945, %v1547
        %1549 = vmatprep.mubr.f32.mxu0 0.0
        %1550 = vmatmul.mubr.f32.gmra.mxu0 %v776
        %v1551 = vpop.f32.mrf.mxu0
        %v1552 = vadd.f32 %v941, %v1551
        %v1553 = vpop.f32.mrf.mxu0
        %v1554 = vadd.f32 %v945, %v1553
        %1555 = vmatprep.mubr.f32.mxu0 0.0
        %1556 = vmatmul.mubr.f32.gmra.mxu0 %v777
        %v1557 = vpop.f32.mrf.mxu0
        %v1558 = vadd.f32 %v941, %v1557
        %v1559 = vpop.f32.mrf.mxu0
        %v1560 = vadd.f32 %v945, %v1559
        %1561 = vmatprep.mubr.f32.mxu0 0.0
        %1562 = vmatmul.mubr.f32.gmra.mxu0 %v778
        %v1563 = vpop.f32.mrf.mxu0
        %v1564 = vadd.f32 %v941, %v1563
        %v1565 = vpop.f32.mrf.mxu0
        %v1566 = vadd.f32 %v945, %v1565
        %1567 = vmatprep.mubr.f32.mxu0 0.0
        %1568 = vmatmul.mubr.f32.gmra.mxu0 %v779
        %v1569 = vpop.f32.mrf.mxu0
        %v1570 = vadd.f32 %v941, %v1569
        %v1571 = vpop.f32.mrf.mxu0
        %v1572 = vadd.f32 %v945, %v1571
        %1573 = vmatprep.mubr.f32.mxu0 0.0
        %1574 = vmatmul.mubr.f32.gmra.mxu0 %v780
        %v1575 = vpop.f32.mrf.mxu0
        %v1576 = vadd.f32 %v941, %v1575
        %v1577 = vpop.f32.mrf.mxu0
        %v1578 = vadd.f32 %v945, %v1577
        %1579 = vmatprep.mubr.f32.mxu0 0.0
        %1580 = vmatmul.mubr.f32.gmra.mxu0 %v781
        %v1581 = vpop.f32.mrf.mxu0
        %v1582 = vadd.f32 %v941, %v1581
        %v1583 = vpop.f32.mrf.mxu0
        %v1584 = vadd.f32 %v945, %v1583
        %1585 = vmatprep.mubr.f32.mxu0 0.0
        %1586 = vmatmul.mubr.f32.gmra.mxu0 %v782
        %v1587 = vpop.f32.mrf.mxu0
        %v1588 = vadd.f32 %v941, %v1587
        %v1589 = vpop.f32.mrf.mxu0
        %v1590 = vadd.f32 %v945, %v1589
        %1591 = vmatprep.mubr.f32.mxu0 0.0
        %1592 = vmatmul.mubr.f32.gmra.mxu0 %v783
        %v1593 = vpop.f32.mrf.mxu0
        %v1594 = vadd.f32 %v941, %v1593
        %v1595 = vpop.f32.mrf.mxu0
        %v1596 = vadd.f32 %v945, %v1595
        %1597 = vdwg.mxu0
        %v1598 = vld [vmem:[#allocation2] sm:$0xff]
        %v1599 = vmax.f32 %v1021, %v1027
        %v1600 = vmax.f32 %v1599, %v1033
        %v1601 = vmax.f32 %v1600, %v1039
        %v1602 = vmax.f32 %v1601, %v1045
        %v1603 = vmax.f32 %v1602, %v1051
        %v1604 = vmax.f32 %v1603, %v1057
        %v1605 = vmax.f32 %v1604, %v1063
        %v1606 = vmax.f32 %v1605, %v1069
        %v1607 = vmax.f32 %v1606, %v1075
        %v1608 = vmax.f32 %v1607, %v1081
        %v1609 = vmax.f32 %v1608, %v1087
        %v1610 = vmax.f32 %v1609, %v1093
        %v1611 = vmax.f32 %v1610, %v1099
        %v1612 = vmax.f32 %v1611, %v1105
        %v1613 = vmax.f32 %v1612, %v1111
        %v1614 = vrot.slane %v1613, 4
        %v1615 = vmax.f32 %v1613, %v1614
        %v1616 = vrot.slane %v1615, 2
        %v1617 = vmax.f32 %v1615, %v1616
        %v1618 = vrot.slane %v1617, 1
        %v1619 = vmax.f32 %v1617, %v1618
        %v1620 = vmax.f32 %v1023, %v1029
        %v1621 = vmax.f32 %v1620, %v1035
        %v1622 = vmax.f32 %v1621, %v1041
        %v1623 = vmax.f32 %v1622, %v1047
        %v1624 = vmax.f32 %v1623, %v1053
        %v1625 = vmax.f32 %v1624, %v1059
        %v1626 = vmax.f32 %v1625, %v1065
        %v1627 = vmax.f32 %v1626, %v1071
        %v1628 = vmax.f32 %v1627, %v1077
        %v1629 = vmax.f32 %v1628, %v1083
        %v1630 = vmax.f32 %v1629, %v1089
        %v1631 = vmax.f32 %v1630, %v1095
        %v1632 = vmax.f32 %v1631, %v1101
        %v1633 = vmax.f32 %v1632, %v1107
        %v1634 = vmax.f32 %v1633, %v1113
        %v1635 = vrot.slane %v1634, 4
        %v1636 = vmax.f32 %v1634, %v1635
        %v1637 = vrot.slane %v1636, 2
        %v1638 = vmax.f32 %v1636, %v1637
        %v1639 = vrot.slane %v1638, 1
        %v1640 = vmax.f32 %v1638, %v1639
        %v1641 = vmax.f32 %v1182, %v1188
        %v1642 = vmax.f32 %v1641, %v1194
        %v1643 = vmax.f32 %v1642, %v1200
        %v1644 = vmax.f32 %v1643, %v1206
        %v1645 = vmax.f32 %v1644, %v1212
        %v1646 = vmax.f32 %v1645, %v1218
        %v1647 = vmax.f32 %v1646, %v1224
        %v1648 = vmax.f32 %v1647, %v1230
        %v1649 = vmax.f32 %v1648, %v1236
        %v1650 = vmax.f32 %v1649, %v1242
        %v1651 = vmax.f32 %v1650, %v1248
        %v1652 = vmax.f32 %v1651, %v1254
        %v1653 = vmax.f32 %v1652, %v1260
        %v1654 = vmax.f32 %v1653, %v1266
        %v1655 = vmax.f32 %v1654, %v1272
        %v1656 = vrot.slane %v1655, 4
        %v1657 = vmax.f32 %v1655, %v1656
        %v1658 = vrot.slane %v1657, 2
        %v1659 = vmax.f32 %v1657, %v1658
        %v1660 = vrot.slane %v1659, 1
        %v1661 = vmax.f32 %v1659, %v1660
        %v1662 = vmax.f32 %v1184, %v1190
        %v1663 = vmax.f32 %v1662, %v1196
        %v1664 = vmax.f32 %v1663, %v1202
        %v1665 = vmax.f32 %v1664, %v1208
        %v1666 = vmax.f32 %v1665, %v1214
        %v1667 = vmax.f32 %v1666, %v1220
        %v1668 = vmax.f32 %v1667, %v1226
        %v1669 = vmax.f32 %v1668, %v1232
        %v1670 = vmax.f32 %v1669, %v1238
        %v1671 = vmax.f32 %v1670, %v1244
        %v1672 = vmax.f32 %v1671, %v1250
        %v1673 = vmax.f32 %v1672, %v1256
        %v1674 = vmax.f32 %v1673, %v1262
        %v1675 = vmax.f32 %v1674, %v1268
        %v1676 = vmax.f32 %v1675, %v1274
        %v1677 = vrot.slane %v1676, 4
        %v1678 = vmax.f32 %v1676, %v1677
        %v1679 = vrot.slane %v1678, 2
        %v1680 = vmax.f32 %v1678, %v1679
        %v1681 = vrot.slane %v1680, 1
        %v1682 = vmax.f32 %v1680, %v1681
        %v1683 = vmax.f32 %v1343, %v1349
        %v1684 = vmax.f32 %v1683, %v1355
        %v1685 = vmax.f32 %v1684, %v1361
        %v1686 = vmax.f32 %v1685, %v1367
        %v1687 = vmax.f32 %v1686, %v1373
        %v1688 = vmax.f32 %v1687, %v1379
        %v1689 = vmax.f32 %v1688, %v1385
        %v1690 = vmax.f32 %v1689, %v1391
        %v1691 = vmax.f32 %v1690, %v1397
        %v1692 = vmax.f32 %v1691, %v1403
        %v1693 = vmax.f32 %v1692, %v1409
        %v1694 = vmax.f32 %v1693, %v1415
        %v1695 = vmax.f32 %v1694, %v1421
        %v1696 = vmax.f32 %v1695, %v1427
        %v1697 = vmax.f32 %v1696, %v1433
        %v1698 = vrot.slane %v1697, 4
        %v1699 = vmax.f32 %v1697, %v1698
        %v1700 = vrot.slane %v1699, 2
        %v1701 = vmax.f32 %v1699, %v1700
        %v1702 = vrot.slane %v1701, 1
        %v1703 = vmax.f32 %v1701, %v1702
        %v1704 = vmax.f32 %v1345, %v1351
        %v1705 = vmax.f32 %v1704, %v1357
        %v1706 = vmax.f32 %v1705, %v1363
        %v1707 = vmax.f32 %v1706, %v1369
        %v1708 = vmax.f32 %v1707, %v1375
        %v1709 = vmax.f32 %v1708, %v1381
        %v1710 = vmax.f32 %v1709, %v1387
        %v1711 = vmax.f32 %v1710, %v1393
        %v1712 = vmax.f32 %v1711, %v1399
        %v1713 = vmax.f32 %v1712, %v1405
        %v1714 = vmax.f32 %v1713, %v1411
        %v1715 = vmax.f32 %v1714, %v1417
        %v1716 = vmax.f32 %v1715, %v1423
        %v1717 = vmax.f32 %v1716, %v1429
        %v1718 = vmax.f32 %v1717, %v1435
        %v1719 = vrot.slane %v1718, 4
        %v1720 = vmax.f32 %v1718, %v1719
        %v1721 = vrot.slane %v1720, 2
        %v1722 = vmax.f32 %v1720, %v1721
        %v1723 = vrot.slane %v1722, 1
        %v1724 = vmax.f32 %v1722, %v1723
        %v1725 = vmax.f32 %v1504, %v1510
        %v1726 = vmax.f32 %v1725, %v1516
        %v1727 = vmax.f32 %v1726, %v1522
        %v1728 = vmax.f32 %v1727, %v1528
        %v1729 = vmax.f32 %v1728, %v1534
        %v1730 = vmax.f32 %v1729, %v1540
        %v1731 = vmax.f32 %v1730, %v1546
        %v1732 = vmax.f32 %v1731, %v1552
        %v1733 = vmax.f32 %v1732, %v1558
        %v1734 = vmax.f32 %v1733, %v1564
        %v1735 = vmax.f32 %v1734, %v1570
        %v1736 = vmax.f32 %v1735, %v1576
        %v1737 = vmax.f32 %v1736, %v1582
        %v1738 = vmax.f32 %v1737, %v1588
        %v1739 = vmax.f32 %v1738, %v1594
        %v1740 = vrot.slane %v1739, 4
        %v1741 = vmax.f32 %v1739, %v1740
        %v1742 = vrot.slane %v1741, 2
        %v1743 = vmax.f32 %v1741, %v1742
        %v1744 = vrot.slane %v1743, 1
        %v1745 = vmax.f32 %v1743, %v1744
        %v1746 = vmax.f32 %v1506, %v1512
        %v1747 = vmax.f32 %v1746, %v1518
        %v1748 = vmax.f32 %v1747, %v1524
        %v1749 = vmax.f32 %v1748, %v1530
        %v1750 = vmax.f32 %v1749, %v1536
        %v1751 = vmax.f32 %v1750, %v1542
        %v1752 = vmax.f32 %v1751, %v1548
        %v1753 = vmax.f32 %v1752, %v1554
        %v1754 = vmax.f32 %v1753, %v1560
        %v1755 = vmax.f32 %v1754, %v1566
        %v1756 = vmax.f32 %v1755, %v1572
        %v1757 = vmax.f32 %v1756, %v1578
        %v1758 = vmax.f32 %v1757, %v1584
        %v1759 = vmax.f32 %v1758, %v1590
        %v1760 = vmax.f32 %v1759, %v1596
        %v1761 = vrot.slane %v1760, 4
        %v1762 = vmax.f32 %v1760, %v1761
        %v1763 = vrot.slane %v1762, 2
        %v1764 = vmax.f32 %v1762, %v1763
        %v1765 = vrot.slane %v1764, 1
        %v1766 = vmax.f32 %v1764, %v1765
        %v1775 = vcombine.low %v1619, %v1640
        %v1776 = vcombine.low %v1661, %v1682
        %v1777 = vcombine.low %v1703, %v1724
        %v1778 = vcombine.low %v1745, %v1766
        %v1780 = vunpack.c.l.s4 1966171168
        %v1781 = vunpack.c.0.s8 %v1780
        %v1782 = vlaneseq
        %v1783 = vshrl.u32 %v1782, 7
        %v1784 = vsub.s32 %v1781, %v1783
        %v1785 = vrot.slane %v1775, %v1784
        %v1787 = vunpack.c.l.s4 1966171168
        %v1788 = vunpack.c.0.s8 %v1787
        %v1789 = vlaneseq
        %v1790 = vshrl.u32 %v1789, 7
        %v1791 = vsub.s32 %v1788, %v1790
        %v1792 = vrot.slane %v1776, %v1791
        %v1794 = vunpack.c.l.s4 1966171168
        %v1795 = vunpack.c.0.s8 %v1794
        %v1796 = vlaneseq
        %v1797 = vshrl.u32 %v1796, 7
        %v1798 = vsub.s32 %v1795, %v1797
        %v1799 = vrot.slane %v1777, %v1798
        %v1801 = vunpack.c.l.s4 1966171168
        %v1802 = vunpack.c.0.s8 %v1801
        %v1803 = vlaneseq
        %v1804 = vshrl.u32 %v1803, 7
        %v1805 = vsub.s32 %v1802, %v1804
        %v1806 = vrot.slane %v1778, %v1805
        %v1807 = vcombine.low %v1785, %v1792
        %v1808 = vcombine.low %v1799, %v1806
        %v1810 = vunpack.c.l.s4 1966171168
        %v1811 = vunpack.c.0.s8 %v1810
        %v1812 = vlaneseq
        %v1813 = vshrl.u32 %v1812, 7
        %v1814 = vsub.s32 %v1811, %v1813
        %v1815 = vrot.slane %v1807, %v1814
        %v1817 = vunpack.c.l.s4 1966171168
        %v1818 = vunpack.c.0.s8 %v1817
        %v1819 = vlaneseq
        %v1820 = vshrl.u32 %v1819, 7
        %v1821 = vsub.s32 %v1818, %v1820
        %v1822 = vrot.slane %v1808, %v1821
        %v1823 = vcombine.low %v1815, %v1822
        %v1825 = vmax.f32 %v1598, %v1823
        %1826 = vst [vmem:[#allocation2] sm:$0xff] %v1825
        // Predicated region
        $region57: #{tpu_custom_call.1} parent=47 // pred_check
          %p1827 = pneg %p320
        $region58: #{tpu_custom_call.1} parent=47 // pred_check_branch
          %1829 = sbr.rel (%p1827) target = $region60
        $region59: #{tpu_custom_call.1} parent=47 // pred_region
          %v1830 = vld [vmem:[#allocation2] sm:$0xff]
          %1831 = vst [vmem:[%s309] sm:$0xff] %v1830
        $region60: #{tpu_custom_call.1} parent=47 // pred_fallthru
          _
        %s1832 = sand.u32 %s196, 1
        %s1833 = scalar_lea.sflag [#allocation5], %s1832
        %s1834 = sand.u32 %s196, 1
        %s1835 = smul.addr %s1834, 8
        %s1836 = scalar_lea.vmem [#allocation6], %s1835
        // Predicated region
        $region61: #{tpu_custom_call.1} parent=47 // pred_check
          %p1837 = pneg %p206
        $region62: #{tpu_custom_call.1} parent=47 // pred_check_branch
          %1839 = sbr.rel (%p1837) target = $region64
        $region63: #{tpu_custom_call.1} parent=47 // pred_region
          %s1841 = ssub.s32 128, 128
          %1842 = vsyncadd %s1833, %s1841
          %s1843 = smul.addr %s26, 8
          %s1844 = smul.addr %s1843, 16
          %s1845 = scalar_lea.hbm %s7, %s1844
          %s1847 = sshll.u32 %s1836, 4
          %s1848 = int_to_ptr.vmem [resolvable:$true] %s1847
          %1850 = dma.vmem_to_hbm [thread:$0]  %s1848, 128, %s1845, %s1833
        $region64: #{tpu_custom_call.1} parent=47 // pred_fallthru
          _
      $region48: #{tpu_custom_call.1} parent=5 // pred_fallthru
        _
      %p1851 = scmp.le.s32.totalorder 2, %s17
      // Predicated region
      $region65: #{tpu_custom_call.1} parent=5 // pred_check
        %p1852 = pneg %p1851
      $region66: #{tpu_custom_call.1} parent=5 // pred_check_branch
        %1854 = sbr.rel (%p1852) target = $region68
      $region67: #{tpu_custom_call.1} parent=5 // pred_region
        %s1855 = ssub.s32 %s17, 2
        // Predicated region
        $region69: #{tpu_custom_call.1} parent=67 // pred_check
          %p1856 = pneg %p212
        $region70: #{tpu_custom_call.1} parent=67 // pred_check_branch
          %1858 = sbr.rel (%p1856) target = $region72
        $region71: #{tpu_custom_call.1} parent=67 // pred_region
          %s1859 = sand.u32 %s197, 1
          %s1860 = scalar_lea.sflag [#allocation5], %s1859
          %s1861 = sand.u32 %s197, 1
          %s1862 = smul.addr %s1861, 8
          %s1863 = scalar_lea.vmem [#allocation6], %s1862
          %1864 = dma.done %s1860, 128
        $region72: #{tpu_custom_call.1} parent=67 // pred_fallthru
          _
      $region68: #{tpu_custom_call.1} parent=5 // pred_fallthru
        _
    $region6: #{tpu_custom_call.1} parent=1 // loop_footer
      %s21 = sadd.s32 1, %s17
    $region7: #{tpu_custom_call.1} parent=1 // loop_footer_branch
      %16 = sbr.rel target = $region3
    $region8: #{tpu_custom_call.1} parent=1 // loop_exit
      _
    %1865 = vsyncpa [#allocation4], 1
    %s1866 = scalar_lea.sflag [#allocation4], 1
    %1867 = vsyncpa %s1866, 1
    %1868 = vsyncpa [#allocation5], 1
    %s1869 = scalar_lea.sflag [#allocation5], 1
    %1870 = vsyncpa %s1869, 1

</llo_original>
